<compile_context>
chip_gen: v7x
topology: tpu7x:2x2x1
jax: 0.10.0
libtpu: 0.0.40
codegen_flags: <defaults>
</compile_context>

<pallas_src>
import math
import functools

import jax
import jax.numpy as jnp
import numpy as np
from jax.experimental import pallas as pl
from jax.experimental.pallas import tpu as pltpu

N_EMBD = 64
N_HEAD = 4
HEAD_DIM = N_EMBD // N_HEAD
LN_EPS = 1e-5
MASK_NEG = -1e30   # additive bias for masked positions (finite; exp() underflows to exactly 0)


def _layernorm(z, w, b):
    mu = jnp.mean(z, axis=-1, keepdims=True)
    var = jnp.mean((z - mu) * (z - mu), axis=-1, keepdims=True)
    return (z - mu) * jax.lax.rsqrt(var + LN_EPS) * w + b


def _gelu_exact(x):
    # PyTorch nn.GELU() default: exact erf-based GELU.
    return 0.5 * x * (1.0 + jax.lax.erf(x * (1.0 / math.sqrt(2.0))))


def _block_kernel(n_head, head_dim, b_blk, seq_len, shared_mask,
                  xf_ref, bias_ref,
                  wqkv_ref, wo_ref, w1t_ref, b1_ref, w2t_ref, vecs_ref,
                  o_ref):
    H, D, B, T = n_head, head_dim, b_blk, seq_len
    E = H * D
    M = B * T            # rows in the (batch, time)-major layout
    G = H * B            # attention batch (head-major)

    xf = xf_ref[...]                       # (M, E) rows = (b, t): single x stream

    vecs = vecs_ref[...]                   # (6, E): bo, ln1_w, ln1_b, b2, ln2_w, ln2_b
    bo, ln1w, ln1b = vecs[0:1], vecs[1:2], vecs[2:3]
    b2, ln2w, ln2b = vecs[3:4], vecs[4:5], vecs[5:6]

    # ---- fused QKV: one (M, E) @ (E, 3E) matmul (block-diagonal per-head weights) ----
    qkv = jnp.dot(xf, wqkv_ref[...], preferred_element_type=jnp.float32)   # (M, 3E)

    def heads(base):
        # Gather per-head (M, D) lane slices into a head-batched (G, T, D) operand.
        # (16-lane static slices + leading-axis stack; lane dim stays D.)
        cols = [qkv[:, base + h * D: base + (h + 1) * D] for h in range(H)]
        return jnp.stack(cols, axis=0).reshape(G, T, D)                    # rows (h, b, t)

    q = heads(0)
    k = heads(E)
    v = heads(2 * E)

    # ---- scores / masked softmax / PV, head-batched (single MXU sequence each) ----
    scale = 1.0 / math.sqrt(float(D))      # == 1 / sqrt(embed_size / heads)
    s = jnp.einsum('gqd,gkd->gqk', q, k, preferred_element_type=jnp.float32) * scale
    bias = bias_ref[...]
    if shared_mask:
        s = s + bias                                       # (T, T) broadcast over (h, b)
    else:
        s = (s.reshape(H, B, T, T) + bias[None]).reshape(G, T, T)

    s = s - jnp.max(s, axis=-1, keepdims=True)
    p = jnp.exp(s)
    denom = jnp.sum(p, axis=-1, keepdims=True)
    inv = pl.reciprocal(denom, approx=True)                # EUP slot (otherwise idle)
    inv = inv * (2.0 - denom * inv)                        # one Newton step -> f32 accuracy
    p = p * inv

    o3 = jnp.einsum('gqk,gkd->gqd', p, v, preferred_element_type=jnp.float32)   # (G, T, D)

    # ---- merge heads back into lanes and apply ONE (M, E) @ (E, E) output projection ----
    o3 = o3.reshape(H, M, D)
    o_merged = jnp.concatenate([o3[h] for h in range(H)], axis=-1)               # (M, E)
    attn = jnp.dot(o_merged, wo_ref[...], preferred_element_type=jnp.float32) + bo

    # ---- residual + LayerNorm 1 ----
    x1 = _layernorm(attn + xf, ln1w, ln1b)

    # ---- feed-forward: Linear(E, 4E) -> GELU -> Linear(4E, E) ----
    ff = jnp.dot(x1, w1t_ref[...], preferred_element_type=jnp.float32) + b1_ref[...]
    ff = _gelu_exact(ff)
    ff = jnp.dot(ff, w2t_ref[...], preferred_element_type=jnp.float32) + b2

    # ---- residual + LayerNorm 2 ----
    o_ref[...] = _layernorm(ff + x1, ln2w, ln2b)


# ----------------------------------------------------------------------------- tiling / VMEM

def _vmem_capacity_bytes():
    try:
        cap = getattr(pltpu.get_tpu_info(), "vmem_capacity_bytes", None)
        if cap:
            return int(cap)
    except Exception:
        pass
    return 64 * 1024 * 1024          # conservative (v7x) fallback


def _vmem_limit_bytes():
    cap = _vmem_capacity_bytes()
    return int(max(32 * 1024 * 1024, min(int(0.65 * cap), 96 * 1024 * 1024)))


def _choose_batch_block(n_batch, seq_len, *, target_rows=1024):
    """Batch elements per grid step.

    Grows the tile toward ~1k rows/step (amortizes the ~0.35us/step pipeline overhead and
    gives the MXU tall M tiles), subject to an honest per-step VMEM working-set estimate
    (double-buffered I/O + in-kernel temporaries), and keeps the grid >= 2 steps whenever
    the batch allows so both v7x TensorCores get work and DMA/compute overlap exists.
    """
    E, H = N_EMBD, N_HEAD
    budget = int(0.5 * _vmem_capacity_bytes())

    def working_set(b):
        m = b * seq_len
        io = 4 * (2 * m * E + 2 * m * E)                      # x in + out, double-buffered
        params = 4 * (3 * E * E + E * E + 4 * E * E + 4 * E + 4 * E * E + 6 * E)
        temps = 4 * ((3 + 3 + 9 + 4) * m * E                  # qkv, q/k/v, activations, 4E hidden
                     + 2 * H * b * seq_len * seq_len)         # scores + probs
        mask = 4 * seq_len * seq_len
        return int(1.5 * (io + params + temps + mask))        # headroom

    divisors = [d for d in range(1, n_batch + 1) if n_batch % d == 0]
    max_b = n_batch if n_batch < 2 else n_batch // 2          # keep >= 2 grid steps
    cand = [d for d in divisors if d <= max_b and working_set(d) <= budget] or [1]
    big = [d for d in cand if d * seq_len >= target_rows]
    return min(big) if big else max(cand)


# ----------------------------------------------------------------------------- wrapper

def prepare_block_params(params):
    """One-time (per layer) parameter preprocessing -- hoisted out of the forward path."""
    E, H = N_EMBD, N_HEAD
    eye = jnp.eye(H, dtype=jnp.float32)

    def block_diag_t(w):                       # (D, D) torch weight -> (E, E) right-multiplier
        return jnp.kron(eye, w.T)              # x_row @ result == per-head x_h @ w.T

    w_qkv = jnp.concatenate([block_diag_t(params["wq"]),
                             block_diag_t(params["wk"]),
                             block_diag_t(params["wv"])], axis=1)            # (E, 3E)
    wo_t = params["wo"].T                                                    # (E, E)
    w1_t = params["w1"].T                                                    # (E, 4E)
    b1 = params["b1"].reshape(1, 4 * E)
    w2_t = params["w2"].T                                                    # (4E, E)
    vecs = jnp.stack([params["bo"], params["ln1_w"], params["ln1_b"],
                      params["b2"], params["ln2_w"], params["ln2_b"]])       # (6, E)
    return (w_qkv, wo_t, w1_t, b1, w2_t, vecs)


def _mask_to_bias(mask, n_batch):
    """Normalize the mask to an additive bias; shared (T, T) when batch-broadcast."""
    m = jnp.asarray(mask)
    if m.ndim == 4:                       # (Nb, 1, T, T)
        m = m[:, 0]
    if m.ndim == 3 and m.shape[0] == 1:
        m = m[0]
    shared = (m.ndim == 2)
    bias = jnp.where(m == 0, jnp.float32(MASK_NEG), jnp.float32(0.0))
    if not shared:
        assert bias.shape[0] == n_batch, "per-batch mask must match the batch size"
    return bias, shared


def block_forward(x, mask, prepared, *, batch_block=None):
    """x: (N, T, E) f32; mask: (T,T) / (1,1,T,T) / (N,1,T,T), nonzero = visible."""
    N, T, E = x.shape
    H, D = N_HEAD, HEAD_DIM
    assert E == N_EMBD == H * D
    assert T % 8 == 0, "sequence length must be a multiple of 8 (sublane tiling)"

    B = batch_block if batch_block is not None else _choose_batch_block(N, T)
    assert N % B == 0, "batch block must divide N"
    M = B * T
    grid = (N // B,)

    x_flat = x.reshape(N * T, E)                           # (b, t)-major rows
    bias, shared = _mask_to_bias(mask, N)
    w_qkv, wo_t, w1_t, b1, w2_t, vecs = prepared

    def const_spec(p):
        nd = p.ndim
        return pl.BlockSpec(p.shape, lambda i, _nd=nd: (0,) * _nd)

    if shared:
        bias_spec = pl.BlockSpec((T, T), lambda i: (0, 0))       # VMEM-resident, no per-step DMA
    else:
        bias_spec = pl.BlockSpec((B, T, T), lambda i: (i, 0, 0))

    in_specs = [
        pl.BlockSpec((M, E), lambda i: (i, 0)),                  # x: the only activation stream
        bias_spec,
        const_spec(w_qkv), const_spec(wo_t), const_spec(w1_t),
        const_spec(b1), const_spec(w2_t), const_spec(vecs),
    ]
    out_specs = pl.BlockSpec((M, E), lambda i: (i, 0))

    kernel = functools.partial(_block_kernel, H, D, B, T, shared)
    out_flat = pl.pallas_call(
        kernel,
        out_shape=jax.ShapeDtypeStruct((N * T, E), jnp.float32),
        grid_spec=pltpu.PrefetchScalarGridSpec(
            num_scalar_prefetch=0,
            grid=grid,
            in_specs=in_specs,
            out_specs=out_specs,
        ),
        compiler_params=pltpu.CompilerParams(
            dimension_semantics=("parallel",),
            vmem_limit_bytes=_vmem_limit_bytes(),
        ),
    )(x_flat, bias, w_qkv, wo_t, w1_t, b1, w2_t, vecs)
    return out_flat.reshape(N, T, E)


# ----------------------------------------------------------------------------- reference

def block_forward_reference(x, mask, params):
    """Pure-JAX reference mirroring the PyTorch forward exactly."""
    N, T, E = x.shape
    H, D = N_HEAD, HEAD_DIM
    xs = x.reshape(N, T, H, D)
    q = jnp.einsum("nthd,ed->nthe", xs, params["wq"])
    k = jnp.einsum("nthd,ed->nthe", xs, params["wk"])
    v = jnp.einsum("nthd,ed->nthe", xs, params["wv"])
    s = jnp.einsum("nqhd,nkhd->nhqk", q, k) / math.sqrt(E / H)
    s = jnp.where(mask == 0, -jnp.inf, s)
    p = jax.nn.softmax(s, axis=-1)
    o = jnp.einsum("nhql,nlhd->nqhd", p, v).reshape(N, T, E)
    attn = o @ params["wo"].T + params["bo"]
    x1 = _layernorm(attn + x, params["ln1_w"], params["ln1_b"])
    ff = _gelu_exact(x1 @ params["w1"].T + params["b1"]) @ params["w2"].T + params["b2"]
    return _layernorm(ff + x1, params["ln2_w"], params["ln2_b"])


def init_params(key):
    E, D = N_EMBD, HEAD_DIM
    ks = jax.random.split(key, 8)
    return {
        "wq": 0.05 * jax.random.normal(ks[0], (D, D), jnp.float32),
        "wk": 0.05 * jax.random.normal(ks[1], (D, D), jnp.float32),
        "wv": 0.05 * jax.random.normal(ks[2], (D, D), jnp.float32),
        "wo": 0.05 * jax.random.normal(ks[3], (E, E), jnp.float32),
        "bo": 0.01 * jax.random.normal(ks[4], (E,), jnp.float32),
        "ln1_w": jnp.ones((E,), jnp.float32),
        "ln1_b": jnp.zeros((E,), jnp.float32),
        "w1": 0.05 * jax.random.normal(ks[5], (4 * E, E), jnp.float32),
        "b1": 0.01 * jax.random.normal(ks[6], (4 * E,), jnp.float32),
        "w2": 0.05 * jax.random.normal(ks[7], (E, 4 * E), jnp.float32),
        "b2": jnp.zeros((E,), jnp.float32),
        "ln2_w": jnp.ones((E,), jnp.float32),
        "ln2_b": jnp.zeros((E,), jnp.float32),
    }


if __name__ == "__main__":
    N, T = 2, 8
    key = jax.random.PRNGKey(0)
    k_x, k_p = jax.random.split(key)

    x = jax.random.normal(k_x, (N, T, N_EMBD), jnp.float32)
    # Causal mask, shared across batch and heads (broadcasts in the PyTorch module too).
    mask = jnp.tril(jnp.ones((T, T), jnp.float32))

    params = init_params(k_p)
    prepared = prepare_block_params(params)          # hoisted: once per layer, not per call

    out = jax.block_until_ready(block_forward(x, mask, prepared))
    ref = jax.block_until_ready(block_forward_reference(x, mask, params))
    np.testing.assert_allclose(np.asarray(out), np.asarray(ref), atol=2e-5, rtol=2e-5)

    print("KERNEL_OK")
</pallas_src>

<mosaic_0001>
module attributes {stable_mosaic.version = 11 : i64} {
  func.func @_block_kernel(%arg0: i32, %arg1: memref<8x64xf32, #tpu.memory_space<vmem>>, %arg2: memref<8x8xf32, #tpu.memory_space<vmem>>, %arg3: memref<64x192xf32, #tpu.memory_space<vmem>>, %arg4: memref<64x64xf32, #tpu.memory_space<vmem>>, %arg5: memref<64x256xf32, #tpu.memory_space<vmem>>, %arg6: memref<1x256xf32, #tpu.memory_space<vmem>>, %arg7: memref<256x64xf32, #tpu.memory_space<vmem>>, %arg8: memref<6x64xf32, #tpu.memory_space<vmem>>, %arg9: memref<8x64xf32, #tpu.memory_space<vmem>>) attributes {dimension_semantics = [#tpu.dimension_semantics<parallel>], iteration_bounds = array<i64: 2>, scalar_prefetch = 0 : i64, scratch_operands = 0 : i64, tpu.core_type = #tpu.core_type<tc>, window_params = [{transform_indices = @transform_0, window_bounds = array<i64: 8, 64>}, {pipeline_mode = #tpu.pipeline_mode<synchronous>, transform_indices = @transform_1, window_bounds = array<i64: 8, 8>}, {pipeline_mode = #tpu.pipeline_mode<synchronous>, transform_indices = @transform_2, window_bounds = array<i64: 64, 192>}, {pipeline_mode = #tpu.pipeline_mode<synchronous>, transform_indices = @transform_3, window_bounds = array<i64: 64, 64>}, {pipeline_mode = #tpu.pipeline_mode<synchronous>, transform_indices = @transform_4, window_bounds = array<i64: 64, 256>}, {pipeline_mode = #tpu.pipeline_mode<synchronous>, transform_indices = @transform_5, window_bounds = array<i64: 1, 256>}, {pipeline_mode = #tpu.pipeline_mode<synchronous>, transform_indices = @transform_6, window_bounds = array<i64: 256, 64>}, {pipeline_mode = #tpu.pipeline_mode<synchronous>, transform_indices = @transform_7, window_bounds = array<i64: 6, 64>}, {transform_indices = @transform_8, window_bounds = array<i64: 8, 64>}]} {
    %c0 = arith.constant 0 : index
    %c0_0 = arith.constant 0 : index
    %0 = vector.load %arg1[%c0, %c0_0] : memref<8x64xf32, #tpu.memory_space<vmem>>, vector<8x64xf32>
    %c0_1 = arith.constant 0 : index
    %c0_2 = arith.constant 0 : index
    %1 = vector.load %arg8[%c0_1, %c0_2] : memref<6x64xf32, #tpu.memory_space<vmem>>, vector<6x64xf32>
    %2 = vector.extract_strided_slice %1 {offsets = [0, 0], sizes = [1, 64], strides = [1, 1]} : vector<6x64xf32> to vector<1x64xf32>
    %3 = vector.extract_strided_slice %1 {offsets = [1, 0], sizes = [1, 64], strides = [1, 1]} : vector<6x64xf32> to vector<1x64xf32>
    %4 = vector.extract_strided_slice %1 {offsets = [2, 0], sizes = [1, 64], strides = [1, 1]} : vector<6x64xf32> to vector<1x64xf32>
    %5 = vector.extract_strided_slice %1 {offsets = [3, 0], sizes = [1, 64], strides = [1, 1]} : vector<6x64xf32> to vector<1x64xf32>
    %6 = vector.extract_strided_slice %1 {offsets = [4, 0], sizes = [1, 64], strides = [1, 1]} : vector<6x64xf32> to vector<1x64xf32>
    %7 = vector.extract_strided_slice %1 {offsets = [5, 0], sizes = [1, 64], strides = [1, 1]} : vector<6x64xf32> to vector<1x64xf32>
    %c0_3 = arith.constant 0 : index
    %c0_4 = arith.constant 0 : index
    %8 = vector.load %arg3[%c0_3, %c0_4] : memref<64x192xf32, #tpu.memory_space<vmem>>, vector<64x192xf32>
    %cst = arith.constant dense<0.000000e+00> : vector<8x192xf32>
    %9 = tpu.matmul %0, %8, %cst {dimension_numbers = #tpu.dot_dimension_numbers<[1], [0], [0], [1], [0, 0, 1, 1], [], []>} : vector<8x64xf32>, vector<64x192xf32>, vector<8x192xf32> -> vector<8x192xf32>
    %10 = vector.extract_strided_slice %9 {offsets = [0, 0], sizes = [8, 16], strides = [1, 1]} : vector<8x192xf32> to vector<8x16xf32>
    %11 = vector.extract_strided_slice %9 {offsets = [0, 16], sizes = [8, 16], strides = [1, 1]} : vector<8x192xf32> to vector<8x16xf32>
    %12 = vector.extract_strided_slice %9 {offsets = [0, 32], sizes = [8, 16], strides = [1, 1]} : vector<8x192xf32> to vector<8x16xf32>
    %13 = vector.extract_strided_slice %9 {offsets = [0, 48], sizes = [8, 16], strides = [1, 1]} : vector<8x192xf32> to vector<8x16xf32>
    %14 = vector.shape_cast %10 : vector<8x16xf32> to vector<1x8x16xf32>
    %15 = vector.shape_cast %11 : vector<8x16xf32> to vector<1x8x16xf32>
    %16 = vector.shape_cast %12 : vector<8x16xf32> to vector<1x8x16xf32>
    %17 = vector.shape_cast %13 : vector<8x16xf32> to vector<1x8x16xf32>
    %18 = tpu.concatenate %14, %15, %16, %17 in 0 : vector<1x8x16xf32>, vector<1x8x16xf32>, vector<1x8x16xf32>, vector<1x8x16xf32> -> vector<4x8x16xf32>
    %19 = vector.extract_strided_slice %9 {offsets = [0, 64], sizes = [8, 16], strides = [1, 1]} : vector<8x192xf32> to vector<8x16xf32>
    %20 = vector.extract_strided_slice %9 {offsets = [0, 80], sizes = [8, 16], strides = [1, 1]} : vector<8x192xf32> to vector<8x16xf32>
    %21 = vector.extract_strided_slice %9 {offsets = [0, 96], sizes = [8, 16], strides = [1, 1]} : vector<8x192xf32> to vector<8x16xf32>
    %22 = vector.extract_strided_slice %9 {offsets = [0, 112], sizes = [8, 16], strides = [1, 1]} : vector<8x192xf32> to vector<8x16xf32>
    %23 = vector.shape_cast %19 : vector<8x16xf32> to vector<1x8x16xf32>
    %24 = vector.shape_cast %20 : vector<8x16xf32> to vector<1x8x16xf32>
    %25 = vector.shape_cast %21 : vector<8x16xf32> to vector<1x8x16xf32>
    %26 = vector.shape_cast %22 : vector<8x16xf32> to vector<1x8x16xf32>
    %27 = tpu.concatenate %23, %24, %25, %26 in 0 : vector<1x8x16xf32>, vector<1x8x16xf32>, vector<1x8x16xf32>, vector<1x8x16xf32> -> vector<4x8x16xf32>
    %28 = vector.extract_strided_slice %9 {offsets = [0, 128], sizes = [8, 16], strides = [1, 1]} : vector<8x192xf32> to vector<8x16xf32>
    %29 = vector.extract_strided_slice %9 {offsets = [0, 144], sizes = [8, 16], strides = [1, 1]} : vector<8x192xf32> to vector<8x16xf32>
    %30 = vector.extract_strided_slice %9 {offsets = [0, 160], sizes = [8, 16], strides = [1, 1]} : vector<8x192xf32> to vector<8x16xf32>
    %31 = vector.extract_strided_slice %9 {offsets = [0, 176], sizes = [8, 16], strides = [1, 1]} : vector<8x192xf32> to vector<8x16xf32>
    %32 = vector.shape_cast %28 : vector<8x16xf32> to vector<1x8x16xf32>
    %33 = vector.shape_cast %29 : vector<8x16xf32> to vector<1x8x16xf32>
    %34 = vector.shape_cast %30 : vector<8x16xf32> to vector<1x8x16xf32>
    %35 = vector.shape_cast %31 : vector<8x16xf32> to vector<1x8x16xf32>
    %36 = tpu.concatenate %32, %33, %34, %35 in 0 : vector<1x8x16xf32>, vector<1x8x16xf32>, vector<1x8x16xf32>, vector<1x8x16xf32> -> vector<4x8x16xf32>
    "tpu.trace_start"() <{level = 10 : i32, message = "gqd,gkd->gqk"}> : () -> ()
    %cst_5 = arith.constant dense<0.000000e+00> : vector<4x8x8xf32>
    %37 = tpu.matmul %18, %27, %cst_5 {dimension_numbers = #tpu.dot_dimension_numbers<[2], [2], [1], [1], [0, 0, 0, 1, 1, 1], [0], [0]>} : vector<4x8x16xf32>, vector<4x8x16xf32>, vector<4x8x8xf32> -> vector<4x8x8xf32>
    "tpu.trace_stop"() : () -> ()
    %cst_6 = arith.constant 2.500000e-01 : f32
    %38 = vector.broadcast %cst_6 : f32 to vector<4x8x8xf32>
    %39 = arith.mulf %37, %38 : vector<4x8x8xf32>
    %c0_7 = arith.constant 0 : index
    %c0_8 = arith.constant 0 : index
    %40 = vector.load %arg2[%c0_7, %c0_8] : memref<8x8xf32, #tpu.memory_space<vmem>>, vector<8x8xf32>
    %41 = vector.shape_cast %40 : vector<8x8xf32> to vector<1x8x8xf32>
    %42 = vector.broadcast %41 : vector<1x8x8xf32> to vector<4x8x8xf32>
    %43 = arith.addf %39, %42 : vector<4x8x8xf32>
    %cst_9 = arith.constant dense<0xFF800000> : vector<4x8xf32>
    %44 = vector.multi_reduction <maximumf>, %43, %cst_9 [2] : vector<4x8x8xf32> to vector<4x8xf32>
    %45 = vector.shape_cast %44 : vector<4x8xf32> to vector<4x8x1xf32>
    %46 = vector.broadcast %45 : vector<4x8x1xf32> to vector<4x8x8xf32>
    %47 = arith.subf %43, %46 : vector<4x8x8xf32>
    %48 = math.exp %47 : vector<4x8x8xf32>
    %cst_10 = arith.constant dense<0.000000e+00> : vector<4x8xf32>
    %49 = vector.multi_reduction <add>, %48, %cst_10 [2] : vector<4x8x8xf32> to vector<4x8xf32>
    %50 = vector.shape_cast %49 : vector<4x8xf32> to vector<4x8x1xf32>
    %51 = tpu.reciprocal %50 {approx = true} : vector<4x8x1xf32> -> vector<4x8x1xf32>
    %52 = arith.mulf %50, %51 : vector<4x8x1xf32>
    %cst_11 = arith.constant 2.000000e+00 : f32
    %53 = vector.broadcast %cst_11 : f32 to vector<4x8x1xf32>
    %54 = arith.subf %53, %52 : vector<4x8x1xf32>
    %55 = arith.mulf %51, %54 : vector<4x8x1xf32>
    %56 = vector.broadcast %55 : vector<4x8x1xf32> to vector<4x8x8xf32>
    %57 = arith.mulf %48, %56 : vector<4x8x8xf32>
    "tpu.trace_start"() <{level = 10 : i32, message = "gqk,gkd->gqd"}> : () -> ()
    %cst_12 = arith.constant dense<0.000000e+00> : vector<4x8x16xf32>
    %58 = tpu.matmul %57, %36, %cst_12 {dimension_numbers = #tpu.dot_dimension_numbers<[2], [1], [1], [2], [0, 0, 0, 1, 1, 2], [0], [0]>} : vector<4x8x8xf32>, vector<4x8x16xf32>, vector<4x8x16xf32> -> vector<4x8x16xf32>
    "tpu.trace_stop"() : () -> ()
    %59 = vector.extract_strided_slice %58 {offsets = [0, 0, 0], sizes = [1, 8, 16], strides = [1, 1, 1]} : vector<4x8x16xf32> to vector<1x8x16xf32>
    %60 = vector.shape_cast %59 : vector<1x8x16xf32> to vector<8x16xf32>
    %61 = vector.extract_strided_slice %58 {offsets = [1, 0, 0], sizes = [1, 8, 16], strides = [1, 1, 1]} : vector<4x8x16xf32> to vector<1x8x16xf32>
    %62 = vector.shape_cast %61 : vector<1x8x16xf32> to vector<8x16xf32>
    %63 = vector.extract_strided_slice %58 {offsets = [2, 0, 0], sizes = [1, 8, 16], strides = [1, 1, 1]} : vector<4x8x16xf32> to vector<1x8x16xf32>
    %64 = vector.shape_cast %63 : vector<1x8x16xf32> to vector<8x16xf32>
    %65 = vector.extract_strided_slice %58 {offsets = [3, 0, 0], sizes = [1, 8, 16], strides = [1, 1, 1]} : vector<4x8x16xf32> to vector<1x8x16xf32>
    %66 = vector.shape_cast %65 : vector<1x8x16xf32> to vector<8x16xf32>
    %67 = tpu.concatenate %60, %62, %64, %66 in 1 : vector<8x16xf32>, vector<8x16xf32>, vector<8x16xf32>, vector<8x16xf32> -> vector<8x64xf32>
    %c0_13 = arith.constant 0 : index
    %c0_14 = arith.constant 0 : index
    %68 = vector.load %arg4[%c0_13, %c0_14] : memref<64x64xf32, #tpu.memory_space<vmem>>, vector<64x64xf32>
    %cst_15 = arith.constant dense<0.000000e+00> : vector<8x64xf32>
    %69 = tpu.matmul %67, %68, %cst_15 {dimension_numbers = #tpu.dot_dimension_numbers<[1], [0], [0], [1], [0, 0, 1, 1], [], []>} : vector<8x64xf32>, vector<64x64xf32>, vector<8x64xf32> -> vector<8x64xf32>
    %70 = vector.broadcast %2 : vector<1x64xf32> to vector<8x64xf32>
    %71 = arith.addf %69, %70 : vector<8x64xf32>
    %72 = arith.addf %71, %0 : vector<8x64xf32>
    %cst_16 = arith.constant dense<0.000000e+00> : vector<8xf32>
    %73 = vector.multi_reduction <add>, %72, %cst_16 [1] : vector<8x64xf32> to vector<8xf32>
    %74 = vector.shape_cast %73 : vector<8xf32> to vector<8x1xf32>
    %cst_17 = arith.constant 6.400000e+01 : f32
    %75 = vector.broadcast %cst_17 : f32 to vector<8x1xf32>
    %76 = arith.divf %74, %75 : vector<8x1xf32>
    %77 = vector.broadcast %76 : vector<8x1xf32> to vector<8x64xf32>
    %78 = arith.subf %72, %77 : vector<8x64xf32>
    %79 = vector.broadcast %76 : vector<8x1xf32> to vector<8x64xf32>
    %80 = arith.subf %72, %79 : vector<8x64xf32>
    %81 = arith.mulf %78, %80 : vector<8x64xf32>
    %cst_18 = arith.constant dense<0.000000e+00> : vector<8xf32>
    %82 = vector.multi_reduction <add>, %81, %cst_18 [1] : vector<8x64xf32> to vector<8xf32>
    %83 = vector.shape_cast %82 : vector<8xf32> to vector<8x1xf32>
    %cst_19 = arith.constant 6.400000e+01 : f32
    %84 = vector.broadcast %cst_19 : f32 to vector<8x1xf32>
    %85 = arith.divf %83, %84 : vector<8x1xf32>
    %86 = vector.broadcast %76 : vector<8x1xf32> to vector<8x64xf32>
    %87 = arith.subf %72, %86 : vector<8x64xf32>
    %cst_20 = arith.constant 9.99999974E-6 : f32
    %88 = vector.broadcast %cst_20 : f32 to vector<8x1xf32>
    %89 = arith.addf %85, %88 : vector<8x1xf32>
    %90 = math.rsqrt %89 : vector<8x1xf32>
    %91 = vector.broadcast %90 : vector<8x1xf32> to vector<8x64xf32>
    %92 = arith.mulf %87, %91 : vector<8x64xf32>
    %93 = vector.broadcast %3 : vector<1x64xf32> to vector<8x64xf32>
    %94 = arith.mulf %92, %93 : vector<8x64xf32>
    %95 = vector.broadcast %4 : vector<1x64xf32> to vector<8x64xf32>
    %96 = arith.addf %94, %95 : vector<8x64xf32>
    %c0_21 = arith.constant 0 : index
    %c0_22 = arith.constant 0 : index
    %97 = vector.load %arg5[%c0_21, %c0_22] : memref<64x256xf32, #tpu.memory_space<vmem>>, vector<64x256xf32>
    %cst_23 = arith.constant dense<0.000000e+00> : vector<8x256xf32>
    %98 = tpu.matmul %96, %97, %cst_23 {dimension_numbers = #tpu.dot_dimension_numbers<[1], [0], [0], [1], [0, 0, 1, 1], [], []>} : vector<8x64xf32>, vector<64x256xf32>, vector<8x256xf32> -> vector<8x256xf32>
    %c0_24 = arith.constant 0 : index
    %c0_25 = arith.constant 0 : index
    %99 = vector.load %arg6[%c0_24, %c0_25] : memref<1x256xf32, #tpu.memory_space<vmem>>, vector<1x256xf32>
    %100 = vector.broadcast %99 : vector<1x256xf32> to vector<8x256xf32>
    %101 = arith.addf %98, %100 : vector<8x256xf32>
    %cst_26 = arith.constant 5.000000e-01 : f32
    %102 = vector.broadcast %cst_26 : f32 to vector<8x256xf32>
    %103 = arith.mulf %102, %101 : vector<8x256xf32>
    %cst_27 = arith.constant 0.707106769 : f32
    %104 = vector.broadcast %cst_27 : f32 to vector<8x256xf32>
    %105 = arith.mulf %101, %104 : vector<8x256xf32>
    %106 = math.erf %105 : vector<8x256xf32>
    %cst_28 = arith.constant 1.000000e+00 : f32
    %107 = vector.broadcast %cst_28 : f32 to vector<8x256xf32>
    %108 = arith.addf %107, %106 : vector<8x256xf32>
    %109 = arith.mulf %103, %108 : vector<8x256xf32>
    %c0_29 = arith.constant 0 : index
    %c0_30 = arith.constant 0 : index
    %110 = vector.load %arg7[%c0_29, %c0_30] : memref<256x64xf32, #tpu.memory_space<vmem>>, vector<256x64xf32>
    %cst_31 = arith.constant dense<0.000000e+00> : vector<8x64xf32>
    %111 = tpu.matmul %109, %110, %cst_31 {dimension_numbers = #tpu.dot_dimension_numbers<[1], [0], [0], [1], [0, 0, 1, 1], [], []>} : vector<8x256xf32>, vector<256x64xf32>, vector<8x64xf32> -> vector<8x64xf32>
    %112 = vector.broadcast %5 : vector<1x64xf32> to vector<8x64xf32>
    %113 = arith.addf %111, %112 : vector<8x64xf32>
    %114 = arith.addf %113, %96 : vector<8x64xf32>
    %cst_32 = arith.constant dense<0.000000e+00> : vector<8xf32>
    %115 = vector.multi_reduction <add>, %114, %cst_32 [1] : vector<8x64xf32> to vector<8xf32>
    %116 = vector.shape_cast %115 : vector<8xf32> to vector<8x1xf32>
    %cst_33 = arith.constant 6.400000e+01 : f32
    %117 = vector.broadcast %cst_33 : f32 to vector<8x1xf32>
    %118 = arith.divf %116, %117 : vector<8x1xf32>
    %119 = vector.broadcast %118 : vector<8x1xf32> to vector<8x64xf32>
    %120 = arith.subf %114, %119 : vector<8x64xf32>
    %121 = vector.broadcast %118 : vector<8x1xf32> to vector<8x64xf32>
    %122 = arith.subf %114, %121 : vector<8x64xf32>
    %123 = arith.mulf %120, %122 : vector<8x64xf32>
    %cst_34 = arith.constant dense<0.000000e+00> : vector<8xf32>
    %124 = vector.multi_reduction <add>, %123, %cst_34 [1] : vector<8x64xf32> to vector<8xf32>
    %125 = vector.shape_cast %124 : vector<8xf32> to vector<8x1xf32>
    %cst_35 = arith.constant 6.400000e+01 : f32
    %126 = vector.broadcast %cst_35 : f32 to vector<8x1xf32>
    %127 = arith.divf %125, %126 : vector<8x1xf32>
    %128 = vector.broadcast %118 : vector<8x1xf32> to vector<8x64xf32>
    %129 = arith.subf %114, %128 : vector<8x64xf32>
    %cst_36 = arith.constant 9.99999974E-6 : f32
    %130 = vector.broadcast %cst_36 : f32 to vector<8x1xf32>
    %131 = arith.addf %127, %130 : vector<8x1xf32>
    %132 = math.rsqrt %131 : vector<8x1xf32>
    %133 = vector.broadcast %132 : vector<8x1xf32> to vector<8x64xf32>
    %134 = arith.mulf %129, %133 : vector<8x64xf32>
    %135 = vector.broadcast %6 : vector<1x64xf32> to vector<8x64xf32>
    %136 = arith.mulf %134, %135 : vector<8x64xf32>
    %137 = vector.broadcast %7 : vector<1x64xf32> to vector<8x64xf32>
    %138 = arith.addf %136, %137 : vector<8x64xf32>
    %c0_37 = arith.constant 0 : index
    %c0_38 = arith.constant 0 : index
    %139 = vector.load %arg9[%c0_37, %c0_38] : memref<8x64xf32, #tpu.memory_space<vmem>>, vector<8x64xf32>
    tpu.vector_store %arg9[%c0_37, %c0_38], %138 {strides = array<i32>} : memref<8x64xf32, #tpu.memory_space<vmem>>, vector<8x64xf32>,
    return
  }
  func.func @transform_0(%arg0: i32) -> (i32, i32) {
    %c0_i32 = arith.constant 0 : i32
    %c0_i32_0 = arith.constant 0 : i32
    return %arg0, %c0_i32 : i32, i32
  }
  func.func @transform_1(%arg0: i32) -> (i32, i32) {
    %c0_i32 = arith.constant 0 : i32
    %c0_i32_0 = arith.constant 0 : i32
    %c0_i32_1 = arith.constant 0 : i32
    return %c0_i32, %c0_i32_0 : i32, i32
  }
  func.func @transform_2(%arg0: i32) -> (i32, i32) {
    %c0_i32 = arith.constant 0 : i32
    %c0_i32_0 = arith.constant 0 : i32
    %c0_i32_1 = arith.constant 0 : i32
    return %c0_i32, %c0_i32_0 : i32, i32
  }
  func.func @transform_3(%arg0: i32) -> (i32, i32) {
    %c0_i32 = arith.constant 0 : i32
    %c0_i32_0 = arith.constant 0 : i32
    %c0_i32_1 = arith.constant 0 : i32
    return %c0_i32, %c0_i32_0 : i32, i32
  }
  func.func @transform_4(%arg0: i32) -> (i32, i32) {
    %c0_i32 = arith.constant 0 : i32
    %c0_i32_0 = arith.constant 0 : i32
    %c0_i32_1 = arith.constant 0 : i32
    return %c0_i32, %c0_i32_0 : i32, i32
  }
  func.func @transform_5(%arg0: i32) -> (i32, i32) {
    %c0_i32 = arith.constant 0 : i32
    %c0_i32_0 = arith.constant 0 : i32
    %c0_i32_1 = arith.constant 0 : i32
    return %c0_i32, %c0_i32_0 : i32, i32
  }
  func.func @transform_6(%arg0: i32) -> (i32, i32) {
    %c0_i32 = arith.constant 0 : i32
    %c0_i32_0 = arith.constant 0 : i32
    %c0_i32_1 = arith.constant 0 : i32
    return %c0_i32, %c0_i32_0 : i32, i32
  }
  func.func @transform_7(%arg0: i32) -> (i32, i32) {
    %c0_i32 = arith.constant 0 : i32
    %c0_i32_0 = arith.constant 0 : i32
    %c0_i32_1 = arith.constant 0 : i32
    return %c0_i32, %c0_i32_0 : i32, i32
  }
  func.func @transform_8(%arg0: i32) -> (i32, i32) {
    %c0_i32 = arith.constant 0 : i32
    %c0_i32_0 = arith.constant 0 : i32
    return %arg0, %c0_i32 : i32, i32
  }
}

</mosaic_0001>

<llo_original>
// kernel: tpu_custom_call.1
$region0: #{tpu_custom_call.1}
  #allocation0 [shape = 'u32[]', space=smem, size = 0x4, offset = 0x4, fixed_abs, tag = 'smem constant byte address 0x4 - core index']
  #allocation1 [shape = 'u32[144,128]{1,0:T(1,128)}', space=vmem, size = 0x12000, scoped, tag = 'internal scratch']
  %s0 = inlined_call_operand.vmem [shape: f32[16,64], index: 0, kind: input, shape index: {}]
  %s1 = inlined_call_operand.vmem [shape: f32[8,8], index: 1, kind: input, shape index: {}]
  %s2 = inlined_call_operand.vmem [shape: f32[64,192], index: 2, kind: input, shape index: {}]
  %s3 = inlined_call_operand.vmem [shape: f32[64,64], index: 3, kind: input, shape index: {}]
  %s4 = inlined_call_operand.vmem [shape: f32[64,256], index: 4, kind: input, shape index: {}]
  %s5 = inlined_call_operand.vmem [shape: f32[1,256], index: 5, kind: input, shape index: {}]
  %s6 = inlined_call_operand.vmem [shape: f32[256,64], index: 6, kind: input, shape index: {}]
  %s7 = inlined_call_operand.vmem [shape: f32[6,64], index: 7, kind: input, shape index: {}]
  %s8 = inlined_call_operand.hbm [shape: f32[16,64], index: 8, kind: output, shape index: {}]
  %s9 = sld [smem:[#allocation0]]
  $region65: #{tpu_custom_call.1} parent=0
    _
  %s11 = ssub.s32 1, %s9
  %s12 = scalar_select 0, %s11, %s9
  $region1: #{tpu_custom_call.1} parent=0
    #allocation2 [shape = 'u8[8192]{0}', space=vmem, size = 0x2000, scoped, tag = 'output window, operand 0']
    #allocation3 [shape = 's32[2]{0}', space=sflag, size = 0x8, scoped, tag = 'scoped memory for tpu_custom_call.1']
    %13 = vsyncpa [#allocation3], 0
    %s14 = scalar_lea.sflag [#allocation3], 1
    %15 = vsyncpa %s14, 0
    loop: start=0, step=1, limit=4
    $region2: #{tpu_custom_call.1} parent=1 // loop_pre_header
      _
    $region3: #{tpu_custom_call.1} parent=1 // loop_header
      %s17 = sphi 0, %s21
      %p18 = scmp.ge.s32.totalorder %s17, 4
      %s27 = sphi 0, %s29
      %s30 = sphi 0, %s27
      %s31 = sphi 0, %s30
      %s47 = sphi 0, %s31
      %s51 = sphi 0, %s51
      %s53 = sphi 0, %s51
      %s54 = sphi 0, %s53
      %s68 = sphi 0, %s54
      %s72 = sphi 0, %s72
      %s74 = sphi 0, %s72
      %s75 = sphi 0, %s74
      %s89 = sphi 0, %s75
      %s93 = sphi 0, %s93
      %s95 = sphi 0, %s93
      %s96 = sphi 0, %s95
      %s110 = sphi 0, %s96
      %s114 = sphi 0, %s114
      %s116 = sphi 0, %s114
      %s117 = sphi 0, %s116
      %s131 = sphi 0, %s117
      %s135 = sphi 0, %s135
      %s137 = sphi 0, %s135
      %s138 = sphi 0, %s137
      %s152 = sphi 0, %s138
      %s156 = sphi 0, %s156
      %s158 = sphi 0, %s156
      %s159 = sphi 0, %s158
      %s173 = sphi 0, %s159
      %s177 = sphi 0, %s177
      %s179 = sphi 0, %s177
      %s180 = sphi 0, %s179
      %s194 = sphi 0, %s180
      %s200 = sphi 0, %s202
      %s203 = sphi 0, %s200
      %s204 = sphi 0, %s203
      %s220 = sphi 0, %s204
    $region4: #{tpu_custom_call.1} parent=1 // loop_header_branch
      %20 = sbr.rel (%p18) target = $region8
    $region5: #{tpu_custom_call.1} parent=1 // loop_body
      %s22 = ssub.s32 %s17, 1
      %s23 = ssub.s32 %s17, 2
      %s24 = sadd.s32 %s17, 1
      %s25 = ssub.s32 %s17, %s24
      %p26 = scmp.eq.s32.totalorder %s25, 0
      %s28 = sadd.s32 %s27, 1
      %s29 = scalar_select %p26, %s27, %s28
      %p32 = pneg %p26
      %p33 = scmp.eq.s32.totalorder %s17, 1
      %p34 = por %p32, %p33
      %p35 = scmp.ne.s32.totalorder %s27, %s30
      %p36 = scmp.eq.s32.totalorder %s17, 0
      %p37 = por %p35, %p36
      %p38 = scmp.ne.s32.totalorder %s27, %s30
      %p39 = scmp.eq.s32.totalorder %s22, 1
      %p40 = por %p38, %p39
      %p41 = scmp.ne.s32.totalorder %s30, %s31
      %p42 = scmp.eq.s32.totalorder %s22, 0
      %p43 = por %p41, %p42
      %p44 = scmp.ne.s32.totalorder %s30, %s31
      %p45 = scmp.eq.s32.totalorder %s23, 1
      %p46 = por %p44, %p45
      %p48 = scmp.ne.s32.totalorder %s31, %s47
      %p49 = scmp.eq.s32.totalorder %s23, 0
      %p50 = por %p48, %p49
      %s52 = sadd.s32 %s51, 1
      %p55 = scmp.eq.s32.totalorder %s17, 1
      %p56 = scmp.ne.s32.totalorder %s51, %s53
      %p57 = scmp.eq.s32.totalorder %s17, 0
      %p58 = por %p56, %p57
      %p59 = scmp.ne.s32.totalorder %s51, %s53
      %p60 = scmp.eq.s32.totalorder %s22, 1
      %p61 = por %p59, %p60
      %p62 = scmp.ne.s32.totalorder %s53, %s54
      %p63 = scmp.eq.s32.totalorder %s22, 0
      %p64 = por %p62, %p63
      %p65 = scmp.ne.s32.totalorder %s53, %s54
      %p66 = scmp.eq.s32.totalorder %s23, 1
      %p67 = por %p65, %p66
      %p69 = scmp.ne.s32.totalorder %s54, %s68
      %p70 = scmp.eq.s32.totalorder %s23, 0
      %p71 = por %p69, %p70
      %s73 = sadd.s32 %s72, 1
      %p76 = scmp.eq.s32.totalorder %s17, 1
      %p77 = scmp.ne.s32.totalorder %s72, %s74
      %p78 = scmp.eq.s32.totalorder %s17, 0
      %p79 = por %p77, %p78
      %p80 = scmp.ne.s32.totalorder %s72, %s74
      %p81 = scmp.eq.s32.totalorder %s22, 1
      %p82 = por %p80, %p81
      %p83 = scmp.ne.s32.totalorder %s74, %s75
      %p84 = scmp.eq.s32.totalorder %s22, 0
      %p85 = por %p83, %p84
      %p86 = scmp.ne.s32.totalorder %s74, %s75
      %p87 = scmp.eq.s32.totalorder %s23, 1
      %p88 = por %p86, %p87
      %p90 = scmp.ne.s32.totalorder %s75, %s89
      %p91 = scmp.eq.s32.totalorder %s23, 0
      %p92 = por %p90, %p91
      %s94 = sadd.s32 %s93, 1
      %p97 = scmp.eq.s32.totalorder %s17, 1
      %p98 = scmp.ne.s32.totalorder %s93, %s95
      %p99 = scmp.eq.s32.totalorder %s17, 0
      %p100 = por %p98, %p99
      %p101 = scmp.ne.s32.totalorder %s93, %s95
      %p102 = scmp.eq.s32.totalorder %s22, 1
      %p103 = por %p101, %p102
      %p104 = scmp.ne.s32.totalorder %s95, %s96
      %p105 = scmp.eq.s32.totalorder %s22, 0
      %p106 = por %p104, %p105
      %p107 = scmp.ne.s32.totalorder %s95, %s96
      %p108 = scmp.eq.s32.totalorder %s23, 1
      %p109 = por %p107, %p108
      %p111 = scmp.ne.s32.totalorder %s96, %s110
      %p112 = scmp.eq.s32.totalorder %s23, 0
      %p113 = por %p111, %p112
      %s115 = sadd.s32 %s114, 1
      %p118 = scmp.eq.s32.totalorder %s17, 1
      %p119 = scmp.ne.s32.totalorder %s114, %s116
      %p120 = scmp.eq.s32.totalorder %s17, 0
      %p121 = por %p119, %p120
      %p122 = scmp.ne.s32.totalorder %s114, %s116
      %p123 = scmp.eq.s32.totalorder %s22, 1
      %p124 = por %p122, %p123
      %p125 = scmp.ne.s32.totalorder %s116, %s117
      %p126 = scmp.eq.s32.totalorder %s22, 0
      %p127 = por %p125, %p126
      %p128 = scmp.ne.s32.totalorder %s116, %s117
      %p129 = scmp.eq.s32.totalorder %s23, 1
      %p130 = por %p128, %p129
      %p132 = scmp.ne.s32.totalorder %s117, %s131
      %p133 = scmp.eq.s32.totalorder %s23, 0
      %p134 = por %p132, %p133
      %s136 = sadd.s32 %s135, 1
      %p139 = scmp.eq.s32.totalorder %s17, 1
      %p140 = scmp.ne.s32.totalorder %s135, %s137
      %p141 = scmp.eq.s32.totalorder %s17, 0
      %p142 = por %p140, %p141
      %p143 = scmp.ne.s32.totalorder %s135, %s137
      %p144 = scmp.eq.s32.totalorder %s22, 1
      %p145 = por %p143, %p144
      %p146 = scmp.ne.s32.totalorder %s137, %s138
      %p147 = scmp.eq.s32.totalorder %s22, 0
      %p148 = por %p146, %p147
      %p149 = scmp.ne.s32.totalorder %s137, %s138
      %p150 = scmp.eq.s32.totalorder %s23, 1
      %p151 = por %p149, %p150
      %p153 = scmp.ne.s32.totalorder %s138, %s152
      %p154 = scmp.eq.s32.totalorder %s23, 0
      %p155 = por %p153, %p154
      %s157 = sadd.s32 %s156, 1
      %p160 = scmp.eq.s32.totalorder %s17, 1
      %p161 = scmp.ne.s32.totalorder %s156, %s158
      %p162 = scmp.eq.s32.totalorder %s17, 0
      %p163 = por %p161, %p162
      %p164 = scmp.ne.s32.totalorder %s156, %s158
      %p165 = scmp.eq.s32.totalorder %s22, 1
      %p166 = por %p164, %p165
      %p167 = scmp.ne.s32.totalorder %s158, %s159
      %p168 = scmp.eq.s32.totalorder %s22, 0
      %p169 = por %p167, %p168
      %p170 = scmp.ne.s32.totalorder %s158, %s159
      %p171 = scmp.eq.s32.totalorder %s23, 1
      %p172 = por %p170, %p171
      %p174 = scmp.ne.s32.totalorder %s159, %s173
      %p175 = scmp.eq.s32.totalorder %s23, 0
      %p176 = por %p174, %p175
      %s178 = sadd.s32 %s177, 1
      %p181 = scmp.eq.s32.totalorder %s17, 1
      %p182 = scmp.ne.s32.totalorder %s177, %s179
      %p183 = scmp.eq.s32.totalorder %s17, 0
      %p184 = por %p182, %p183
      %p185 = scmp.ne.s32.totalorder %s177, %s179
      %p186 = scmp.eq.s32.totalorder %s22, 1
      %p187 = por %p185, %p186
      %p188 = scmp.ne.s32.totalorder %s179, %s180
      %p189 = scmp.eq.s32.totalorder %s22, 0
      %p190 = por %p188, %p189
      %p191 = scmp.ne.s32.totalorder %s179, %s180
      %p192 = scmp.eq.s32.totalorder %s23, 1
      %p193 = por %p191, %p192
      %p195 = scmp.ne.s32.totalorder %s180, %s194
      %p196 = scmp.eq.s32.totalorder %s23, 0
      %p197 = por %p195, %p196
      %s198 = ssub.s32 %s17, %s24
      %p199 = scmp.eq.s32.totalorder %s198, 0
      %s201 = sadd.s32 %s200, 1
      %s202 = scalar_select %p199, %s200, %s201
      %p205 = pneg %p199
      %p206 = scmp.eq.s32.totalorder %s17, 1
      %p207 = por %p205, %p206
      %p208 = scmp.ne.s32.totalorder %s200, %s203
      %p209 = scmp.eq.s32.totalorder %s17, 0
      %p210 = por %p208, %p209
      %p211 = scmp.ne.s32.totalorder %s200, %s203
      %p212 = scmp.eq.s32.totalorder %s22, 1
      %p213 = por %p211, %p212
      %p214 = scmp.ne.s32.totalorder %s203, %s204
      %p215 = scmp.eq.s32.totalorder %s22, 0
      %p216 = por %p214, %p215
      %p217 = scmp.ne.s32.totalorder %s203, %s204
      %p218 = scmp.eq.s32.totalorder %s23, 1
      %p219 = por %p217, %p218
      %p221 = scmp.ne.s32.totalorder %s204, %s220
      %p222 = scmp.eq.s32.totalorder %s23, 0
      %p223 = por %p221, %p222
      %p224 = scmp.le.s32.totalorder 1, %s17
      %p225 = scmp.lt.s32.totalorder %s17, 3
      %p226 = pnand %p224, %p225
      %p227 = pneg %p226
      // Predicated region
      $region9: #{tpu_custom_call.1} parent=5 // pred_check
        _
      $region10: #{tpu_custom_call.1} parent=5 // pred_check_branch
        %229 = sbr.rel (%p226) target = $region12
      $region11: #{tpu_custom_call.1} parent=5 // pred_region
        %s230 = ssub.s32 %s17, 1
        // Predicated region
        $region13: #{tpu_custom_call.1} parent=11 // pred_check
          %p231 = pneg %p64
        $region14: #{tpu_custom_call.1} parent=11 // pred_check_branch
          %233 = sbr.rel (%p231) target = $region16
        $region15: #{tpu_custom_call.1} parent=11 // pred_region
          _
        $region16: #{tpu_custom_call.1} parent=11 // pred_fallthru
          _
        // Predicated region
        $region17: #{tpu_custom_call.1} parent=11 // pred_check
          %p234 = pneg %p85
        $region18: #{tpu_custom_call.1} parent=11 // pred_check_branch
          %236 = sbr.rel (%p234) target = $region20
        $region19: #{tpu_custom_call.1} parent=11 // pred_region
          _
        $region20: #{tpu_custom_call.1} parent=11 // pred_fallthru
          _
        // Predicated region
        $region21: #{tpu_custom_call.1} parent=11 // pred_check
          %p237 = pneg %p106
        $region22: #{tpu_custom_call.1} parent=11 // pred_check_branch
          %239 = sbr.rel (%p237) target = $region24
        $region23: #{tpu_custom_call.1} parent=11 // pred_region
          _
        $region24: #{tpu_custom_call.1} parent=11 // pred_fallthru
          _
        // Predicated region
        $region25: #{tpu_custom_call.1} parent=11 // pred_check
          %p240 = pneg %p127
        $region26: #{tpu_custom_call.1} parent=11 // pred_check_branch
          %242 = sbr.rel (%p240) target = $region28
        $region27: #{tpu_custom_call.1} parent=11 // pred_region
          _
        $region28: #{tpu_custom_call.1} parent=11 // pred_fallthru
          _
        // Predicated region
        $region29: #{tpu_custom_call.1} parent=11 // pred_check
          %p243 = pneg %p148
        $region30: #{tpu_custom_call.1} parent=11 // pred_check_branch
          %245 = sbr.rel (%p243) target = $region32
        $region31: #{tpu_custom_call.1} parent=11 // pred_region
          _
        $region32: #{tpu_custom_call.1} parent=11 // pred_fallthru
          _
        // Predicated region
        $region33: #{tpu_custom_call.1} parent=11 // pred_check
          %p246 = pneg %p169
        $region34: #{tpu_custom_call.1} parent=11 // pred_check_branch
          %248 = sbr.rel (%p246) target = $region36
        $region35: #{tpu_custom_call.1} parent=11 // pred_region
          _
        $region36: #{tpu_custom_call.1} parent=11 // pred_fallthru
          _
        // Predicated region
        $region37: #{tpu_custom_call.1} parent=11 // pred_check
          %p249 = pneg %p190
        $region38: #{tpu_custom_call.1} parent=11 // pred_check_branch
          %251 = sbr.rel (%p249) target = $region40
        $region39: #{tpu_custom_call.1} parent=11 // pred_region
          _
        $region40: #{tpu_custom_call.1} parent=11 // pred_fallthru
          _
      $region12: #{tpu_custom_call.1} parent=5 // pred_fallthru
        _
      %p252 = scmp.lt.s32.totalorder %s17, 2
      // Predicated region
      $region41: #{tpu_custom_call.1} parent=5 // pred_check
        %p253 = pneg %p252
      $region42: #{tpu_custom_call.1} parent=5 // pred_check_branch
        %255 = sbr.rel (%p253) target = $region44
      $region43: #{tpu_custom_call.1} parent=5 // pred_region
        // Predicated region
        $region45: #{tpu_custom_call.1} parent=43 // pred_check
          %p256 = pneg %p37
        $region46: #{tpu_custom_call.1} parent=43 // pred_check_branch
          %258 = sbr.rel (%p256) target = $region48
        $region47: #{tpu_custom_call.1} parent=43 // pred_region
          %p259 = scmp.lt.s32.totalorder %s17, 1
          %s260 = scalar_select %p259, %s17, 1
          %s261 = smul.addr %s260, 8
          %s262 = scalar_lea.vmem %s0, %s261
        $region48: #{tpu_custom_call.1} parent=43 // pred_fallthru
          _
      $region44: #{tpu_custom_call.1} parent=5 // pred_fallthru
        _
      %p263 = scmp.le.s32.totalorder 1, %s17
      %p264 = scmp.lt.s32.totalorder %s17, 3
      %p265 = pnand %p263, %p264
      %p266 = pneg %p265
      // Predicated region
      $region49: #{tpu_custom_call.1} parent=5 // pred_check
        _
      $region50: #{tpu_custom_call.1} parent=5 // pred_check_branch
        %268 = sbr.rel (%p265) target = $region52
      $region51: #{tpu_custom_call.1} parent=5 // pred_region
        %s269 = ssub.s32 %s17, 1
        %p270 = scmp.lt.s32.totalorder %s22, 1
        %s271 = scalar_select %p270, %s22, 1
        %s272 = smul.addr %s271, 8
        %s273 = scalar_lea.vmem %s0, %s272
        %p274 = pneg %p43
        %p275 = pneg %p40
        %p276 = pneg %p64
        %p277 = pneg %p61
        %p278 = pneg %p85
        %p279 = pneg %p82
        %p280 = pneg %p106
        %p281 = pneg %p103
        %p282 = pneg %p127
        %p283 = pneg %p124
        %p284 = pneg %p148
        %p285 = pneg %p145
        %p286 = pneg %p169
        %p287 = pneg %p166
        %p288 = pneg %p190
        %p289 = pneg %p187
        %p290 = pneg %p216
        %p291 = pneg %p213
        %s292 = sand.u32 %s203, 1
        %s293 = scalar_lea.sflag [#allocation3], %s292
        %s294 = sand.u32 %s203, 1
        %s295 = smul.addr %s294, 8
        %s296 = scalar_lea.vmem [#allocation2], %s295
        %p297 = scmp.lt.s32.totalorder %s22, 1
        %s298 = scalar_select %p297, %s22, 1
        %s299 = smul.addr %s298, 8
        %s300 = scalar_lea.vmem %s0, %s299
        %v301 = vld [vmem:[%s300] sm:$0xff]
        %v302 = vld [vmem:[%s7] sm:$0x3f]
        %v303 = vld [vmem:[%s2] sm:$0xff]
        %v304 = vld [vmem:[%s2 + $0x8] sm:$0xff]
        %v305 = vld [vmem:[%s2 + $0x10] sm:$0xff]
        %v306 = vld [vmem:[%s2 + $0x18] sm:$0xff]
        %v307 = vld [vmem:[%s2 + $0x20] sm:$0xff]
        %v308 = vld [vmem:[%s2 + $0x28] sm:$0xff]
        %v309 = vld [vmem:[%s2 + $0x30] sm:$0xff]
        %v310 = vld [vmem:[%s2 + $0x38] sm:$0xff]
        %v311 = vld [vmem:[%s2 + $0x40] sm:$0xff]
        %v312 = vld [vmem:[%s2 + $0x48] sm:$0xff]
        %v313 = vld [vmem:[%s2 + $0x50] sm:$0xff]
        %v314 = vld [vmem:[%s2 + $0x58] sm:$0xff]
        %v315 = vld [vmem:[%s2 + $0x60] sm:$0xff]
        %v316 = vld [vmem:[%s2 + $0x68] sm:$0xff]
        %v317 = vld [vmem:[%s2 + $0x70] sm:$0xff]
        %v318 = vld [vmem:[%s2 + $0x78] sm:$0xff]
        %vm319 = vcmask 523264
        %v321 = vsel %vm319, %v301, 0
        %323 = vmatprep.subr.mxu0 %v304
        %324 = vmatpush1.msra.mxu0 %v303
        %325 = vmatprep.subr.mxu0 %v306
        %326 = vmatpush1.msra.mxu0 %v305
        %327 = vmatprep.subr.mxu0 %v308
        %328 = vmatpush1.msra.mxu0 %v307
        %329 = vmatprep.subr.mxu0 %v310
        %330 = vmatpush1.msra.mxu0 %v309
        %331 = vmatprep.subr.mxu0 %v312
        %332 = vmatpush1.msra.mxu0 %v311
        %333 = vmatprep.subr.mxu0 %v314
        %334 = vmatpush1.msra.mxu0 %v313
        %335 = vmatprep.subr.mxu0 %v316
        %336 = vmatpush1.msra.mxu0 %v315
        %337 = vmatprep.subr.mxu0 %v318
        %338 = vmatpush1.msra.mxu0 %v317
        %339 = vmatprep.subr.mxu0 0.0
        %340 = vmatpush1.msra.mxu0 0.0
        %341 = vmatprep.subr.mxu0 0.0
        %342 = vmatpush1.msra.mxu0 0.0
        %343 = vmatprep.subr.mxu0 0.0
        %344 = vmatpush1.msra.mxu0 0.0
        %345 = vmatprep.subr.mxu0 0.0
        %346 = vmatpush1.msra.mxu0 0.0
        %347 = vmatprep.subr.mxu0 0.0
        %348 = vmatpush1.msra.mxu0 0.0
        %349 = vmatprep.subr.mxu0 0.0
        %350 = vmatpush1.msra.mxu0 0.0
        %351 = vmatprep.subr.mxu0 0.0
        %352 = vmatpush1.msra.mxu0 0.0
        %353 = vmatprep.subr.mxu0 0.0
        %354 = vmatpush1.msra.mxu0 0.0
        %355 = vmatprep.subr.mxu0 0.0
        %356 = vmatpush1.msra.mxu0 0.0
        %357 = vmatprep.subr.mxu0 0.0
        %358 = vmatpush1.msra.mxu0 0.0
        %359 = vmatprep.subr.mxu0 0.0
        %360 = vmatpush1.msra.mxu0 0.0
        %361 = vmatprep.subr.mxu0 0.0
        %362 = vmatpush1.msra.mxu0 0.0
        %363 = vmatprep.subr.mxu0 0.0
        %364 = vmatpush1.msra.mxu0 0.0
        %365 = vmatprep.subr.mxu0 0.0
        %366 = vmatpush1.msra.mxu0 0.0
        %367 = vmatprep.subr.mxu0 0.0
        %368 = vmatpush1.msra.mxu0 0.0
        %369 = vmatprep.subr.mxu0 0.0
        %370 = vmatpush1.msra.mxu0 0.0
        %371 = vmatprep.subr.mxu0 0.0
        %372 = vmatpush1.msra.mxu0 0.0
        %373 = vmatprep.subr.mxu0 0.0
        %374 = vmatpush1.msra.mxu0 0.0
        %375 = vmatprep.subr.mxu0 0.0
        %376 = vmatpush1.msra.mxu0 0.0
        %377 = vmatprep.subr.mxu0 0.0
        %378 = vmatpush1.msra.mxu0 0.0
        %379 = vmatprep.subr.mxu0 0.0
        %380 = vmatpush1.msra.mxu0 0.0
        %381 = vmatprep.subr.mxu0 0.0
        %382 = vmatpush1.msra.mxu0 0.0
        %383 = vmatprep.subr.mxu0 0.0
        %384 = vmatpush1.msra.mxu0 0.0
        %385 = vmatprep.subr.mxu0 0.0
        %386 = vmatpush1.msra.mxu0 0.0
        %387 = vmatprep.mubr.f32.mxu0 0.0
        %388 = vmatmul.mubr.f32.gmra.mrb[0].mxu0 %v321
        %v389 = vpop.f32.mrb[0].mxu0
        %v390 = vadd.f32 0.0, %v389
        %v391 = vpop.f32.mrb[0].mxu0
        %v392 = vadd.f32 0.0, %v391
        %393 = vdwg.mxu0
        %395 = vrot.lane.b32.xlu0 %v390, 112
        %v396 = vpop.permute.xlu0 %395
        %397 = vrot.lane.b32.xlu0 %v390, 96
        %v398 = vpop.permute.xlu0 %397
        %399 = vrot.lane.b32.xlu0 %v390, 80
        %v400 = vpop.permute.xlu0 %399
        %402 = vrot.lane.b32.xlu0 %v392, 112
        %v403 = vpop.permute.xlu0 %402
        %405 = vrot.lane.b32.xlu0 %v392, 96
        %v406 = vpop.permute.xlu0 %405
        %408 = vrot.lane.b32.xlu0 %v392, 80
        %v409 = vpop.permute.xlu0 %408
        %411 = vrot.lane.b32.xlu0 %v390, 64
        %v412 = vpop.permute.xlu0 %411
        %vm413 = vcmask 130048
        %v414 = vsel %vm413, %v390, 0
        %v416 = vsel %vm413, %v412, 0
        %418 = vmatprep.subr.mxu0 0.0
        %419 = vmatpush1.xpose.msra.mxu0 %v416
        %420 = vmatprep.subr.mxu0 0.0
        %421 = vmatpush1.xpose.msra.mxu0 0.0
        %422 = vmatprep.subr.mxu0 0.0
        %423 = vmatpush1.xpose.msra.mxu0 0.0
        %424 = vmatprep.subr.mxu0 0.0
        %425 = vmatpush1.xpose.msra.mxu0 0.0
        %426 = vmatprep.subr.mxu0 0.0
        %427 = vmatpush1.xpose.msra.mxu0 0.0
        %428 = vmatprep.subr.mxu0 0.0
        %429 = vmatpush1.xpose.msra.mxu0 0.0
        %430 = vmatprep.subr.mxu0 0.0
        %431 = vmatpush1.xpose.msra.mxu0 0.0
        %432 = vmatprep.subr.mxu0 0.0
        %433 = vmatpush1.xpose.msra.mxu0 0.0
        %434 = vmatprep.subr.mxu0 0.0
        %435 = vmatpush1.xpose.msra.mxu0 0.0
        %436 = vmatprep.subr.mxu0 0.0
        %437 = vmatpush1.xpose.msra.mxu0 0.0
        %438 = vmatprep.subr.mxu0 0.0
        %439 = vmatpush1.xpose.msra.mxu0 0.0
        %440 = vmatprep.subr.mxu0 0.0
        %441 = vmatpush1.xpose.msra.mxu0 0.0
        %442 = vmatprep.subr.mxu0 0.0
        %443 = vmatpush1.xpose.msra.mxu0 0.0
        %444 = vmatprep.subr.mxu0 0.0
        %445 = vmatpush1.xpose.msra.mxu0 0.0
        %446 = vmatprep.subr.mxu0 0.0
        %447 = vmatpush1.xpose.msra.mxu0 0.0
        %448 = vmatprep.subr.mxu0 0.0
        %449 = vmatpush1.xpose.msra.mxu0 0.0
        %450 = vmatprep.subr.mxu0 0.0
        %451 = vmatpush1.xpose.msra.mxu0 0.0
        %452 = vmatprep.subr.mxu0 0.0
        %453 = vmatpush1.xpose.msra.mxu0 0.0
        %454 = vmatprep.subr.mxu0 0.0
        %455 = vmatpush1.xpose.msra.mxu0 0.0
        %456 = vmatprep.subr.mxu0 0.0
        %457 = vmatpush1.xpose.msra.mxu0 0.0
        %458 = vmatprep.subr.mxu0 0.0
        %459 = vmatpush1.xpose.msra.mxu0 0.0
        %460 = vmatprep.subr.mxu0 0.0
        %461 = vmatpush1.xpose.msra.mxu0 0.0
        %462 = vmatprep.subr.mxu0 0.0
        %463 = vmatpush1.xpose.msra.mxu0 0.0
        %464 = vmatprep.subr.mxu0 0.0
        %465 = vmatpush1.xpose.msra.mxu0 0.0
        %466 = vmatprep.subr.mxu0 0.0
        %467 = vmatpush1.xpose.msra.mxu0 0.0
        %468 = vmatprep.subr.mxu0 0.0
        %469 = vmatpush1.xpose.msra.mxu0 0.0
        %470 = vmatprep.subr.mxu0 0.0
        %471 = vmatpush1.xpose.msra.mxu0 0.0
        %472 = vmatprep.subr.mxu0 0.0
        %473 = vmatpush1.xpose.msra.mxu0 0.0
        %474 = vmatprep.subr.mxu0 0.0
        %475 = vmatpush1.xpose.msra.mxu0 0.0
        %476 = vmatprep.subr.mxu0 0.0
        %477 = vmatpush1.xpose.msra.mxu0 0.0
        %478 = vmatprep.subr.mxu0 0.0
        %479 = vmatpush1.xpose.msra.mxu0 0.0
        %480 = vmatprep.subr.mxu0 0.0
        %481 = vmatpush1.xpose.msra.mxu0 0.0
        %482 = vmatprep.mubr.f32.mxu0 0.0
        %483 = vmatmul.mubr.f32.gmra.mrb[0].mxu0 %v414
        %v484 = vpop.f32.mrb[0].mxu0
        %v485 = vadd.f32 0.0, %v484
        %v486 = vpop.f32.mrb[0].mxu0
        %487 = vdwg.mxu0
        %488 = vrot.lane.b32.xlu0 %v396, 64
        %v489 = vpop.permute.xlu0 %488
        %v490 = vsel %vm413, %v396, 0
        %v492 = vsel %vm413, %v489, 0
        %494 = vmatprep.subr.mxu0 0.0
        %495 = vmatpush1.xpose.msra.mxu0 %v492
        %496 = vmatprep.subr.mxu0 0.0
        %497 = vmatpush1.xpose.msra.mxu0 0.0
        %498 = vmatprep.subr.mxu0 0.0
        %499 = vmatpush1.xpose.msra.mxu0 0.0
        %500 = vmatprep.subr.mxu0 0.0
        %501 = vmatpush1.xpose.msra.mxu0 0.0
        %502 = vmatprep.subr.mxu0 0.0
        %503 = vmatpush1.xpose.msra.mxu0 0.0
        %504 = vmatprep.subr.mxu0 0.0
        %505 = vmatpush1.xpose.msra.mxu0 0.0
        %506 = vmatprep.subr.mxu0 0.0
        %507 = vmatpush1.xpose.msra.mxu0 0.0
        %508 = vmatprep.subr.mxu0 0.0
        %509 = vmatpush1.xpose.msra.mxu0 0.0
        %510 = vmatprep.subr.mxu0 0.0
        %511 = vmatpush1.xpose.msra.mxu0 0.0
        %512 = vmatprep.subr.mxu0 0.0
        %513 = vmatpush1.xpose.msra.mxu0 0.0
        %514 = vmatprep.subr.mxu0 0.0
        %515 = vmatpush1.xpose.msra.mxu0 0.0
        %516 = vmatprep.subr.mxu0 0.0
        %517 = vmatpush1.xpose.msra.mxu0 0.0
        %518 = vmatprep.subr.mxu0 0.0
        %519 = vmatpush1.xpose.msra.mxu0 0.0
        %520 = vmatprep.subr.mxu0 0.0
        %521 = vmatpush1.xpose.msra.mxu0 0.0
        %522 = vmatprep.subr.mxu0 0.0
        %523 = vmatpush1.xpose.msra.mxu0 0.0
        %524 = vmatprep.subr.mxu0 0.0
        %525 = vmatpush1.xpose.msra.mxu0 0.0
        %526 = vmatprep.subr.mxu0 0.0
        %527 = vmatpush1.xpose.msra.mxu0 0.0
        %528 = vmatprep.subr.mxu0 0.0
        %529 = vmatpush1.xpose.msra.mxu0 0.0
        %530 = vmatprep.subr.mxu0 0.0
        %531 = vmatpush1.xpose.msra.mxu0 0.0
        %532 = vmatprep.subr.mxu0 0.0
        %533 = vmatpush1.xpose.msra.mxu0 0.0
        %534 = vmatprep.subr.mxu0 0.0
        %535 = vmatpush1.xpose.msra.mxu0 0.0
        %536 = vmatprep.subr.mxu0 0.0
        %537 = vmatpush1.xpose.msra.mxu0 0.0
        %538 = vmatprep.subr.mxu0 0.0
        %539 = vmatpush1.xpose.msra.mxu0 0.0
        %540 = vmatprep.subr.mxu0 0.0
        %541 = vmatpush1.xpose.msra.mxu0 0.0
        %542 = vmatprep.subr.mxu0 0.0
        %543 = vmatpush1.xpose.msra.mxu0 0.0
        %544 = vmatprep.subr.mxu0 0.0
        %545 = vmatpush1.xpose.msra.mxu0 0.0
        %546 = vmatprep.subr.mxu0 0.0
        %547 = vmatpush1.xpose.msra.mxu0 0.0
        %548 = vmatprep.subr.mxu0 0.0
        %549 = vmatpush1.xpose.msra.mxu0 0.0
        %550 = vmatprep.subr.mxu0 0.0
        %551 = vmatpush1.xpose.msra.mxu0 0.0
        %552 = vmatprep.subr.mxu0 0.0
        %553 = vmatpush1.xpose.msra.mxu0 0.0
        %554 = vmatprep.subr.mxu0 0.0
        %555 = vmatpush1.xpose.msra.mxu0 0.0
        %556 = vmatprep.subr.mxu0 0.0
        %557 = vmatpush1.xpose.msra.mxu0 0.0
        %558 = vmatprep.mubr.f32.mxu0 0.0
        %559 = vmatmul.mubr.f32.gmra.mrb[0].mxu0 %v490
        %v560 = vpop.f32.mrb[0].mxu0
        %v561 = vadd.f32 0.0, %v560
        %v562 = vpop.f32.mrb[0].mxu0
        %563 = vdwg.mxu0
        %564 = vrot.lane.b32.xlu0 %v398, 64
        %v565 = vpop.permute.xlu0 %564
        %v566 = vsel %vm413, %v398, 0
        %v568 = vsel %vm413, %v565, 0
        %570 = vmatprep.subr.mxu0 0.0
        %571 = vmatpush1.xpose.msra.mxu0 %v568
        %572 = vmatprep.subr.mxu0 0.0
        %573 = vmatpush1.xpose.msra.mxu0 0.0
        %574 = vmatprep.subr.mxu0 0.0
        %575 = vmatpush1.xpose.msra.mxu0 0.0
        %576 = vmatprep.subr.mxu0 0.0
        %577 = vmatpush1.xpose.msra.mxu0 0.0
        %578 = vmatprep.subr.mxu0 0.0
        %579 = vmatpush1.xpose.msra.mxu0 0.0
        %580 = vmatprep.subr.mxu0 0.0
        %581 = vmatpush1.xpose.msra.mxu0 0.0
        %582 = vmatprep.subr.mxu0 0.0
        %583 = vmatpush1.xpose.msra.mxu0 0.0
        %584 = vmatprep.subr.mxu0 0.0
        %585 = vmatpush1.xpose.msra.mxu0 0.0
        %586 = vmatprep.subr.mxu0 0.0
        %587 = vmatpush1.xpose.msra.mxu0 0.0
        %588 = vmatprep.subr.mxu0 0.0
        %589 = vmatpush1.xpose.msra.mxu0 0.0
        %590 = vmatprep.subr.mxu0 0.0
        %591 = vmatpush1.xpose.msra.mxu0 0.0
        %592 = vmatprep.subr.mxu0 0.0
        %593 = vmatpush1.xpose.msra.mxu0 0.0
        %594 = vmatprep.subr.mxu0 0.0
        %595 = vmatpush1.xpose.msra.mxu0 0.0
        %596 = vmatprep.subr.mxu0 0.0
        %597 = vmatpush1.xpose.msra.mxu0 0.0
        %598 = vmatprep.subr.mxu0 0.0
        %599 = vmatpush1.xpose.msra.mxu0 0.0
        %600 = vmatprep.subr.mxu0 0.0
        %601 = vmatpush1.xpose.msra.mxu0 0.0
        %602 = vmatprep.subr.mxu0 0.0
        %603 = vmatpush1.xpose.msra.mxu0 0.0
        %604 = vmatprep.subr.mxu0 0.0
        %605 = vmatpush1.xpose.msra.mxu0 0.0
        %606 = vmatprep.subr.mxu0 0.0
        %607 = vmatpush1.xpose.msra.mxu0 0.0
        %608 = vmatprep.subr.mxu0 0.0
        %609 = vmatpush1.xpose.msra.mxu0 0.0
        %610 = vmatprep.subr.mxu0 0.0
        %611 = vmatpush1.xpose.msra.mxu0 0.0
        %612 = vmatprep.subr.mxu0 0.0
        %613 = vmatpush1.xpose.msra.mxu0 0.0
        %614 = vmatprep.subr.mxu0 0.0
        %615 = vmatpush1.xpose.msra.mxu0 0.0
        %616 = vmatprep.subr.mxu0 0.0
        %617 = vmatpush1.xpose.msra.mxu0 0.0
        %618 = vmatprep.subr.mxu0 0.0
        %619 = vmatpush1.xpose.msra.mxu0 0.0
        %620 = vmatprep.subr.mxu0 0.0
        %621 = vmatpush1.xpose.msra.mxu0 0.0
        %622 = vmatprep.subr.mxu0 0.0
        %623 = vmatpush1.xpose.msra.mxu0 0.0
        %624 = vmatprep.subr.mxu0 0.0
        %625 = vmatpush1.xpose.msra.mxu0 0.0
        %626 = vmatprep.subr.mxu0 0.0
        %627 = vmatpush1.xpose.msra.mxu0 0.0
        %628 = vmatprep.subr.mxu0 0.0
        %629 = vmatpush1.xpose.msra.mxu0 0.0
        %630 = vmatprep.subr.mxu0 0.0
        %631 = vmatpush1.xpose.msra.mxu0 0.0
        %632 = vmatprep.subr.mxu0 0.0
        %633 = vmatpush1.xpose.msra.mxu0 0.0
        %634 = vmatprep.mubr.f32.mxu0 0.0
        %635 = vmatmul.mubr.f32.gmra.mrb[0].mxu0 %v566
        %v636 = vpop.f32.mrb[0].mxu0
        %v637 = vadd.f32 0.0, %v636
        %v638 = vpop.f32.mrb[0].mxu0
        %639 = vdwg.mxu0
        %640 = vrot.lane.b32.xlu0 %v400, 64
        %v641 = vpop.permute.xlu0 %640
        %v642 = vsel %vm413, %v400, 0
        %v644 = vsel %vm413, %v641, 0
        %646 = vmatprep.subr.mxu0 0.0
        %647 = vmatpush1.xpose.msra.mxu0 %v644
        %648 = vmatprep.subr.mxu0 0.0
        %649 = vmatpush1.xpose.msra.mxu0 0.0
        %650 = vmatprep.subr.mxu0 0.0
        %651 = vmatpush1.xpose.msra.mxu0 0.0
        %652 = vmatprep.subr.mxu0 0.0
        %653 = vmatpush1.xpose.msra.mxu0 0.0
        %654 = vmatprep.subr.mxu0 0.0
        %655 = vmatpush1.xpose.msra.mxu0 0.0
        %656 = vmatprep.subr.mxu0 0.0
        %657 = vmatpush1.xpose.msra.mxu0 0.0
        %658 = vmatprep.subr.mxu0 0.0
        %659 = vmatpush1.xpose.msra.mxu0 0.0
        %660 = vmatprep.subr.mxu0 0.0
        %661 = vmatpush1.xpose.msra.mxu0 0.0
        %662 = vmatprep.subr.mxu0 0.0
        %663 = vmatpush1.xpose.msra.mxu0 0.0
        %664 = vmatprep.subr.mxu0 0.0
        %665 = vmatpush1.xpose.msra.mxu0 0.0
        %666 = vmatprep.subr.mxu0 0.0
        %667 = vmatpush1.xpose.msra.mxu0 0.0
        %668 = vmatprep.subr.mxu0 0.0
        %669 = vmatpush1.xpose.msra.mxu0 0.0
        %670 = vmatprep.subr.mxu0 0.0
        %671 = vmatpush1.xpose.msra.mxu0 0.0
        %672 = vmatprep.subr.mxu0 0.0
        %673 = vmatpush1.xpose.msra.mxu0 0.0
        %674 = vmatprep.subr.mxu0 0.0
        %675 = vmatpush1.xpose.msra.mxu0 0.0
        %676 = vmatprep.subr.mxu0 0.0
        %677 = vmatpush1.xpose.msra.mxu0 0.0
        %678 = vmatprep.subr.mxu0 0.0
        %679 = vmatpush1.xpose.msra.mxu0 0.0
        %680 = vmatprep.subr.mxu0 0.0
        %681 = vmatpush1.xpose.msra.mxu0 0.0
        %682 = vmatprep.subr.mxu0 0.0
        %683 = vmatpush1.xpose.msra.mxu0 0.0
        %684 = vmatprep.subr.mxu0 0.0
        %685 = vmatpush1.xpose.msra.mxu0 0.0
        %686 = vmatprep.subr.mxu0 0.0
        %687 = vmatpush1.xpose.msra.mxu0 0.0
        %688 = vmatprep.subr.mxu0 0.0
        %689 = vmatpush1.xpose.msra.mxu0 0.0
        %690 = vmatprep.subr.mxu0 0.0
        %691 = vmatpush1.xpose.msra.mxu0 0.0
        %692 = vmatprep.subr.mxu0 0.0
        %693 = vmatpush1.xpose.msra.mxu0 0.0
        %694 = vmatprep.subr.mxu0 0.0
        %695 = vmatpush1.xpose.msra.mxu0 0.0
        %696 = vmatprep.subr.mxu0 0.0
        %697 = vmatpush1.xpose.msra.mxu0 0.0
        %698 = vmatprep.subr.mxu0 0.0
        %699 = vmatpush1.xpose.msra.mxu0 0.0
        %700 = vmatprep.subr.mxu0 0.0
        %701 = vmatpush1.xpose.msra.mxu0 0.0
        %702 = vmatprep.subr.mxu0 0.0
        %703 = vmatpush1.xpose.msra.mxu0 0.0
        %704 = vmatprep.subr.mxu0 0.0
        %705 = vmatpush1.xpose.msra.mxu0 0.0
        %706 = vmatprep.subr.mxu0 0.0
        %707 = vmatpush1.xpose.msra.mxu0 0.0
        %708 = vmatprep.subr.mxu0 0.0
        %709 = vmatpush1.xpose.msra.mxu0 0.0
        %710 = vmatprep.mubr.f32.mxu0 0.0
        %711 = vmatmul.mubr.f32.gmra.mrb[0].mxu0 %v642
        %v712 = vpop.f32.mrb[0].mxu0
        %v713 = vadd.f32 0.0, %v712
        %v714 = vpop.f32.mrb[0].mxu0
        %715 = vdwg.mxu0
        %v716 = vmul.f32 %v485, 0.25
        %v717 = vmul.f32 %v561, 0.25
        %v718 = vmul.f32 %v637, 0.25
        %v719 = vmul.f32 %v713, 0.25
        %v720 = vld [vmem:[%s1] sm:$0xff]
        %v721 = vadd.f32 %v716, %v720
        %v722 = vadd.f32 %v717, %v720
        %v723 = vadd.f32 %v718, %v720
        %v724 = vadd.f32 %v719, %v720
        %vm725 = vcmask 64512
        %v726 = vsel %vm725, %v721, -inf
        %727 = vmax.xlane.f32.xlu0 %v726
        %v728 = vpop.xlane.xlu0 %727
        %v729 = vsel %vm725, %v722, -inf
        %730 = vmax.xlane.f32.xlu0 %v729
        %v731 = vpop.xlane.xlu0 %730
        %v732 = vsel %vm725, %v723, -inf
        %733 = vmax.xlane.f32.xlu0 %v732
        %v734 = vpop.xlane.xlu0 %733
        %v735 = vsel %vm725, %v724, -inf
        %736 = vmax.xlane.f32.xlu0 %v735
        %v737 = vpop.xlane.xlu0 %736
        %v738 = vsub.f32 %v721, %v728
        %v739 = vsub.f32 %v722, %v731
        %v740 = vsub.f32 %v723, %v734
        %v741 = vsub.f32 %v724, %v737
        %v742 = vmul.f32 %v738, 1.442695
        %v743 = vpow.pop %v742
        %v744 = vmul.f32 %v739, 1.442695
        %v745 = vpow.pop %v744
        %v746 = vmul.f32 %v740, 1.442695
        %v747 = vpow.pop %v746
        %v748 = vmul.f32 %v741, 1.442695
        %v749 = vpow.pop %v748
        %v750 = vsel %vm725, %v743, 0.0
        %751 = vadd.xlane.f32.xlu0 %v750
        %v752 = vpop.xlane.xlu0 %751
        %v753 = vsel %vm725, %v745, 0.0
        %754 = vadd.xlane.f32.xlu0 %v753
        %v755 = vpop.xlane.xlu0 %754
        %v756 = vsel %vm725, %v747, 0.0
        %757 = vadd.xlane.f32.xlu0 %v756
        %v758 = vpop.xlane.xlu0 %757
        %v759 = vsel %vm725, %v749, 0.0
        %760 = vadd.xlane.f32.xlu0 %v759
        %v761 = vpop.xlane.xlu0 %760
        %v762 = vrcp.pop %v752
        %v763 = vrcp.pop %v755
        %v764 = vrcp.pop %v758
        %v765 = vrcp.pop %v761
        %v766 = vmul.f32 %v752, %v762
        %v767 = vmul.f32 %v755, %v763
        %v768 = vmul.f32 %v758, %v764
        %v769 = vmul.f32 %v761, %v765
        %v770 = vsub.f32 2.0, %v766
        %v771 = vsub.f32 2.0, %v767
        %v772 = vsub.f32 2.0, %v768
        %v773 = vsub.f32 2.0, %v769
        %v774 = vmul.f32 %v762, %v770
        %v775 = vmul.f32 %v763, %v771
        %v776 = vmul.f32 %v764, %v772
        %v777 = vmul.f32 %v765, %v773
        %v778 = vmul.f32 %v743, %v774
        %v779 = vmul.f32 %v745, %v775
        %v780 = vmul.f32 %v747, %v776
        %v781 = vmul.f32 %v749, %v777
        %v783 = vsel %vm725, %v778, 0
        %785 = vmatprep.subr.mxu0 0.0
        %786 = vmatpush1.msra.mxu0 %v392
        %787 = vmatprep.subr.mxu0 0.0
        %788 = vmatpush1.msra.mxu0 0.0
        %789 = vmatprep.subr.mxu0 0.0
        %790 = vmatpush1.msra.mxu0 0.0
        %791 = vmatprep.subr.mxu0 0.0
        %792 = vmatpush1.msra.mxu0 0.0
        %793 = vmatprep.subr.mxu0 0.0
        %794 = vmatpush1.msra.mxu0 0.0
        %795 = vmatprep.subr.mxu0 0.0
        %796 = vmatpush1.msra.mxu0 0.0
        %797 = vmatprep.subr.mxu0 0.0
        %798 = vmatpush1.msra.mxu0 0.0
        %799 = vmatprep.subr.mxu0 0.0
        %800 = vmatpush1.msra.mxu0 0.0
        %801 = vmatprep.subr.mxu0 0.0
        %802 = vmatpush1.msra.mxu0 0.0
        %803 = vmatprep.subr.mxu0 0.0
        %804 = vmatpush1.msra.mxu0 0.0
        %805 = vmatprep.subr.mxu0 0.0
        %806 = vmatpush1.msra.mxu0 0.0
        %807 = vmatprep.subr.mxu0 0.0
        %808 = vmatpush1.msra.mxu0 0.0
        %809 = vmatprep.subr.mxu0 0.0
        %810 = vmatpush1.msra.mxu0 0.0
        %811 = vmatprep.subr.mxu0 0.0
        %812 = vmatpush1.msra.mxu0 0.0
        %813 = vmatprep.subr.mxu0 0.0
        %814 = vmatpush1.msra.mxu0 0.0
        %815 = vmatprep.subr.mxu0 0.0
        %816 = vmatpush1.msra.mxu0 0.0
        %817 = vmatprep.subr.mxu0 0.0
        %818 = vmatpush1.msra.mxu0 0.0
        %819 = vmatprep.subr.mxu0 0.0
        %820 = vmatpush1.msra.mxu0 0.0
        %821 = vmatprep.subr.mxu0 0.0
        %822 = vmatpush1.msra.mxu0 0.0
        %823 = vmatprep.subr.mxu0 0.0
        %824 = vmatpush1.msra.mxu0 0.0
        %825 = vmatprep.subr.mxu0 0.0
        %826 = vmatpush1.msra.mxu0 0.0
        %827 = vmatprep.subr.mxu0 0.0
        %828 = vmatpush1.msra.mxu0 0.0
        %829 = vmatprep.subr.mxu0 0.0
        %830 = vmatpush1.msra.mxu0 0.0
        %831 = vmatprep.subr.mxu0 0.0
        %832 = vmatpush1.msra.mxu0 0.0
        %833 = vmatprep.subr.mxu0 0.0
        %834 = vmatpush1.msra.mxu0 0.0
        %835 = vmatprep.subr.mxu0 0.0
        %836 = vmatpush1.msra.mxu0 0.0
        %837 = vmatprep.subr.mxu0 0.0
        %838 = vmatpush1.msra.mxu0 0.0
        %839 = vmatprep.subr.mxu0 0.0
        %840 = vmatpush1.msra.mxu0 0.0
        %841 = vmatprep.subr.mxu0 0.0
        %842 = vmatpush1.msra.mxu0 0.0
        %843 = vmatprep.subr.mxu0 0.0
        %844 = vmatpush1.msra.mxu0 0.0
        %845 = vmatprep.subr.mxu0 0.0
        %846 = vmatpush1.msra.mxu0 0.0
        %847 = vmatprep.subr.mxu0 0.0
        %848 = vmatpush1.msra.mxu0 0.0
        %849 = vmatprep.mubr.f32.mxu0 0.0
        %850 = vmatmul.mubr.f32.gmra.mrb[0].mxu0 %v783
        %v851 = vpop.f32.mrb[0].mxu0
        %v852 = vadd.f32 0.0, %v851
        %v853 = vpop.f32.mrb[0].mxu0
        %854 = vdwg.mxu0
        %v856 = vsel %vm725, %v779, 0
        %858 = vmatprep.subr.mxu0 0.0
        %859 = vmatpush1.msra.mxu0 %v403
        %860 = vmatprep.subr.mxu0 0.0
        %861 = vmatpush1.msra.mxu0 0.0
        %862 = vmatprep.subr.mxu0 0.0
        %863 = vmatpush1.msra.mxu0 0.0
        %864 = vmatprep.subr.mxu0 0.0
        %865 = vmatpush1.msra.mxu0 0.0
        %866 = vmatprep.subr.mxu0 0.0
        %867 = vmatpush1.msra.mxu0 0.0
        %868 = vmatprep.subr.mxu0 0.0
        %869 = vmatpush1.msra.mxu0 0.0
        %870 = vmatprep.subr.mxu0 0.0
        %871 = vmatpush1.msra.mxu0 0.0
        %872 = vmatprep.subr.mxu0 0.0
        %873 = vmatpush1.msra.mxu0 0.0
        %874 = vmatprep.subr.mxu0 0.0
        %875 = vmatpush1.msra.mxu0 0.0
        %876 = vmatprep.subr.mxu0 0.0
        %877 = vmatpush1.msra.mxu0 0.0
        %878 = vmatprep.subr.mxu0 0.0
        %879 = vmatpush1.msra.mxu0 0.0
        %880 = vmatprep.subr.mxu0 0.0
        %881 = vmatpush1.msra.mxu0 0.0
        %882 = vmatprep.subr.mxu0 0.0
        %883 = vmatpush1.msra.mxu0 0.0
        %884 = vmatprep.subr.mxu0 0.0
        %885 = vmatpush1.msra.mxu0 0.0
        %886 = vmatprep.subr.mxu0 0.0
        %887 = vmatpush1.msra.mxu0 0.0
        %888 = vmatprep.subr.mxu0 0.0
        %889 = vmatpush1.msra.mxu0 0.0
        %890 = vmatprep.subr.mxu0 0.0
        %891 = vmatpush1.msra.mxu0 0.0
        %892 = vmatprep.subr.mxu0 0.0
        %893 = vmatpush1.msra.mxu0 0.0
        %894 = vmatprep.subr.mxu0 0.0
        %895 = vmatpush1.msra.mxu0 0.0
        %896 = vmatprep.subr.mxu0 0.0
        %897 = vmatpush1.msra.mxu0 0.0
        %898 = vmatprep.subr.mxu0 0.0
        %899 = vmatpush1.msra.mxu0 0.0
        %900 = vmatprep.subr.mxu0 0.0
        %901 = vmatpush1.msra.mxu0 0.0
        %902 = vmatprep.subr.mxu0 0.0
        %903 = vmatpush1.msra.mxu0 0.0
        %904 = vmatprep.subr.mxu0 0.0
        %905 = vmatpush1.msra.mxu0 0.0
        %906 = vmatprep.subr.mxu0 0.0
        %907 = vmatpush1.msra.mxu0 0.0
        %908 = vmatprep.subr.mxu0 0.0
        %909 = vmatpush1.msra.mxu0 0.0
        %910 = vmatprep.subr.mxu0 0.0
        %911 = vmatpush1.msra.mxu0 0.0
        %912 = vmatprep.subr.mxu0 0.0
        %913 = vmatpush1.msra.mxu0 0.0
        %914 = vmatprep.subr.mxu0 0.0
        %915 = vmatpush1.msra.mxu0 0.0
        %916 = vmatprep.subr.mxu0 0.0
        %917 = vmatpush1.msra.mxu0 0.0
        %918 = vmatprep.subr.mxu0 0.0
        %919 = vmatpush1.msra.mxu0 0.0
        %920 = vmatprep.subr.mxu0 0.0
        %921 = vmatpush1.msra.mxu0 0.0
        %922 = vmatprep.mubr.f32.mxu0 0.0
        %923 = vmatmul.mubr.f32.gmra.mrb[0].mxu0 %v856
        %v924 = vpop.f32.mrb[0].mxu0
        %v925 = vadd.f32 0.0, %v924
        %v926 = vpop.f32.mrb[0].mxu0
        %927 = vdwg.mxu0
        %v929 = vsel %vm725, %v780, 0
        %931 = vmatprep.subr.mxu0 0.0
        %932 = vmatpush1.msra.mxu0 %v406
        %933 = vmatprep.subr.mxu0 0.0
        %934 = vmatpush1.msra.mxu0 0.0
        %935 = vmatprep.subr.mxu0 0.0
        %936 = vmatpush1.msra.mxu0 0.0
        %937 = vmatprep.subr.mxu0 0.0
        %938 = vmatpush1.msra.mxu0 0.0
        %939 = vmatprep.subr.mxu0 0.0
        %940 = vmatpush1.msra.mxu0 0.0
        %941 = vmatprep.subr.mxu0 0.0
        %942 = vmatpush1.msra.mxu0 0.0
        %943 = vmatprep.subr.mxu0 0.0
        %944 = vmatpush1.msra.mxu0 0.0
        %945 = vmatprep.subr.mxu0 0.0
        %946 = vmatpush1.msra.mxu0 0.0
        %947 = vmatprep.subr.mxu0 0.0
        %948 = vmatpush1.msra.mxu0 0.0
        %949 = vmatprep.subr.mxu0 0.0
        %950 = vmatpush1.msra.mxu0 0.0
        %951 = vmatprep.subr.mxu0 0.0
        %952 = vmatpush1.msra.mxu0 0.0
        %953 = vmatprep.subr.mxu0 0.0
        %954 = vmatpush1.msra.mxu0 0.0
        %955 = vmatprep.subr.mxu0 0.0
        %956 = vmatpush1.msra.mxu0 0.0
        %957 = vmatprep.subr.mxu0 0.0
        %958 = vmatpush1.msra.mxu0 0.0
        %959 = vmatprep.subr.mxu0 0.0
        %960 = vmatpush1.msra.mxu0 0.0
        %961 = vmatprep.subr.mxu0 0.0
        %962 = vmatpush1.msra.mxu0 0.0
        %963 = vmatprep.subr.mxu0 0.0
        %964 = vmatpush1.msra.mxu0 0.0
        %965 = vmatprep.subr.mxu0 0.0
        %966 = vmatpush1.msra.mxu0 0.0
        %967 = vmatprep.subr.mxu0 0.0
        %968 = vmatpush1.msra.mxu0 0.0
        %969 = vmatprep.subr.mxu0 0.0
        %970 = vmatpush1.msra.mxu0 0.0
        %971 = vmatprep.subr.mxu0 0.0
        %972 = vmatpush1.msra.mxu0 0.0
        %973 = vmatprep.subr.mxu0 0.0
        %974 = vmatpush1.msra.mxu0 0.0
        %975 = vmatprep.subr.mxu0 0.0
        %976 = vmatpush1.msra.mxu0 0.0
        %977 = vmatprep.subr.mxu0 0.0
        %978 = vmatpush1.msra.mxu0 0.0
        %979 = vmatprep.subr.mxu0 0.0
        %980 = vmatpush1.msra.mxu0 0.0
        %981 = vmatprep.subr.mxu0 0.0
        %982 = vmatpush1.msra.mxu0 0.0
        %983 = vmatprep.subr.mxu0 0.0
        %984 = vmatpush1.msra.mxu0 0.0
        %985 = vmatprep.subr.mxu0 0.0
        %986 = vmatpush1.msra.mxu0 0.0
        %987 = vmatprep.subr.mxu0 0.0
        %988 = vmatpush1.msra.mxu0 0.0
        %989 = vmatprep.subr.mxu0 0.0
        %990 = vmatpush1.msra.mxu0 0.0
        %991 = vmatprep.subr.mxu0 0.0
        %992 = vmatpush1.msra.mxu0 0.0
        %993 = vmatprep.subr.mxu0 0.0
        %994 = vmatpush1.msra.mxu0 0.0
        %995 = vmatprep.mubr.f32.mxu0 0.0
        %996 = vmatmul.mubr.f32.gmra.mrb[0].mxu0 %v929
        %v997 = vpop.f32.mrb[0].mxu0
        %v998 = vadd.f32 0.0, %v997
        %v999 = vpop.f32.mrb[0].mxu0
        %1000 = vdwg.mxu0
        %v1002 = vsel %vm725, %v781, 0
        %1004 = vmatprep.subr.mxu0 0.0
        %1005 = vmatpush1.msra.mxu0 %v409
        %1006 = vmatprep.subr.mxu0 0.0
        %1007 = vmatpush1.msra.mxu0 0.0
        %1008 = vmatprep.subr.mxu0 0.0
        %1009 = vmatpush1.msra.mxu0 0.0
        %1010 = vmatprep.subr.mxu0 0.0
        %1011 = vmatpush1.msra.mxu0 0.0
        %1012 = vmatprep.subr.mxu0 0.0
        %1013 = vmatpush1.msra.mxu0 0.0
        %1014 = vmatprep.subr.mxu0 0.0
        %1015 = vmatpush1.msra.mxu0 0.0
        %1016 = vmatprep.subr.mxu0 0.0
        %1017 = vmatpush1.msra.mxu0 0.0
        %1018 = vmatprep.subr.mxu0 0.0
        %1019 = vmatpush1.msra.mxu0 0.0
        %1020 = vmatprep.subr.mxu0 0.0
        %1021 = vmatpush1.msra.mxu0 0.0
        %1022 = vmatprep.subr.mxu0 0.0
        %1023 = vmatpush1.msra.mxu0 0.0
        %1024 = vmatprep.subr.mxu0 0.0
        %1025 = vmatpush1.msra.mxu0 0.0
        %1026 = vmatprep.subr.mxu0 0.0
        %1027 = vmatpush1.msra.mxu0 0.0
        %1028 = vmatprep.subr.mxu0 0.0
        %1029 = vmatpush1.msra.mxu0 0.0
        %1030 = vmatprep.subr.mxu0 0.0
        %1031 = vmatpush1.msra.mxu0 0.0
        %1032 = vmatprep.subr.mxu0 0.0
        %1033 = vmatpush1.msra.mxu0 0.0
        %1034 = vmatprep.subr.mxu0 0.0
        %1035 = vmatpush1.msra.mxu0 0.0
        %1036 = vmatprep.subr.mxu0 0.0
        %1037 = vmatpush1.msra.mxu0 0.0
        %1038 = vmatprep.subr.mxu0 0.0
        %1039 = vmatpush1.msra.mxu0 0.0
        %1040 = vmatprep.subr.mxu0 0.0
        %1041 = vmatpush1.msra.mxu0 0.0
        %1042 = vmatprep.subr.mxu0 0.0
        %1043 = vmatpush1.msra.mxu0 0.0
        %1044 = vmatprep.subr.mxu0 0.0
        %1045 = vmatpush1.msra.mxu0 0.0
        %1046 = vmatprep.subr.mxu0 0.0
        %1047 = vmatpush1.msra.mxu0 0.0
        %1048 = vmatprep.subr.mxu0 0.0
        %1049 = vmatpush1.msra.mxu0 0.0
        %1050 = vmatprep.subr.mxu0 0.0
        %1051 = vmatpush1.msra.mxu0 0.0
        %1052 = vmatprep.subr.mxu0 0.0
        %1053 = vmatpush1.msra.mxu0 0.0
        %1054 = vmatprep.subr.mxu0 0.0
        %1055 = vmatpush1.msra.mxu0 0.0
        %1056 = vmatprep.subr.mxu0 0.0
        %1057 = vmatpush1.msra.mxu0 0.0
        %1058 = vmatprep.subr.mxu0 0.0
        %1059 = vmatpush1.msra.mxu0 0.0
        %1060 = vmatprep.subr.mxu0 0.0
        %1061 = vmatpush1.msra.mxu0 0.0
        %1062 = vmatprep.subr.mxu0 0.0
        %1063 = vmatpush1.msra.mxu0 0.0
        %1064 = vmatprep.subr.mxu0 0.0
        %1065 = vmatpush1.msra.mxu0 0.0
        %1066 = vmatprep.subr.mxu0 0.0
        %1067 = vmatpush1.msra.mxu0 0.0
        %1068 = vmatprep.mubr.f32.mxu0 0.0
        %1069 = vmatmul.mubr.f32.gmra.mrb[0].mxu0 %v1002
        %v1070 = vpop.f32.mrb[0].mxu0
        %v1071 = vadd.f32 0.0, %v1070
        %v1072 = vpop.f32.mrb[0].mxu0
        %1073 = vdwg.mxu0
        %1075 = vrot.lane.b32.xlu0 %v925, 16
        %v1076 = vpop.permute.xlu0 %1075
        %1079 = vrot.lane.b32.xlu0 %v998, 32
        %v1080 = vpop.permute.xlu0 %1079
        %1083 = vrot.lane.b32.xlu0 %v1071, 48
        %v1084 = vpop.permute.xlu0 %1083
        %v1086 = vsel %vm413, %v852, %v1076
        %vm1087 = vcmask 261120
        %v1088 = vsel %vm1087, %v1086, %v1080
        %vm1089 = vcmask 392192
        %v1090 = vsel %vm1089, %v1088, %v1084
        %v1091 = vld [vmem:[%s3] sm:$0xff]
        %v1092 = vld [vmem:[%s3 + $0x8] sm:$0xff]
        %v1093 = vld [vmem:[%s3 + $0x10] sm:$0xff]
        %v1094 = vld [vmem:[%s3 + $0x18] sm:$0xff]
        %v1095 = vld [vmem:[%s3 + $0x20] sm:$0xff]
        %v1096 = vld [vmem:[%s3 + $0x28] sm:$0xff]
        %v1097 = vld [vmem:[%s3 + $0x30] sm:$0xff]
        %v1098 = vld [vmem:[%s3 + $0x38] sm:$0xff]
        %v1099 = vlaneseq
        %v1100 = vshrl.u32 %v1099, 7
        %v1101 = vsub.s32 0, %v1100
        %v1102 = vrot.slane %v302, %v1101
        %v1104 = vsel %vm319, %v1090, 0
        %1106 = vmatprep.subr.mxu0 0.0
        %1107 = vmatpush1.msra.mxu0 %v1091
        %1108 = vmatprep.subr.mxu0 0.0
        %1109 = vmatpush1.msra.mxu0 %v1092
        %1110 = vmatprep.subr.mxu0 0.0
        %1111 = vmatpush1.msra.mxu0 %v1093
        %1112 = vmatprep.subr.mxu0 0.0
        %1113 = vmatpush1.msra.mxu0 %v1094
        %1114 = vmatprep.subr.mxu0 0.0
        %1115 = vmatpush1.msra.mxu0 %v1095
        %1116 = vmatprep.subr.mxu0 0.0
        %1117 = vmatpush1.msra.mxu0 %v1096
        %1118 = vmatprep.subr.mxu0 0.0
        %1119 = vmatpush1.msra.mxu0 %v1097
        %1120 = vmatprep.subr.mxu0 0.0
        %1121 = vmatpush1.msra.mxu0 %v1098
        %1122 = vmatprep.subr.mxu0 0.0
        %1123 = vmatpush1.msra.mxu0 0.0
        %1124 = vmatprep.subr.mxu0 0.0
        %1125 = vmatpush1.msra.mxu0 0.0
        %1126 = vmatprep.subr.mxu0 0.0
        %1127 = vmatpush1.msra.mxu0 0.0
        %1128 = vmatprep.subr.mxu0 0.0
        %1129 = vmatpush1.msra.mxu0 0.0
        %1130 = vmatprep.subr.mxu0 0.0
        %1131 = vmatpush1.msra.mxu0 0.0
        %1132 = vmatprep.subr.mxu0 0.0
        %1133 = vmatpush1.msra.mxu0 0.0
        %1134 = vmatprep.subr.mxu0 0.0
        %1135 = vmatpush1.msra.mxu0 0.0
        %1136 = vmatprep.subr.mxu0 0.0
        %1137 = vmatpush1.msra.mxu0 0.0
        %1138 = vmatprep.subr.mxu0 0.0
        %1139 = vmatpush1.msra.mxu0 0.0
        %1140 = vmatprep.subr.mxu0 0.0
        %1141 = vmatpush1.msra.mxu0 0.0
        %1142 = vmatprep.subr.mxu0 0.0
        %1143 = vmatpush1.msra.mxu0 0.0
        %1144 = vmatprep.subr.mxu0 0.0
        %1145 = vmatpush1.msra.mxu0 0.0
        %1146 = vmatprep.subr.mxu0 0.0
        %1147 = vmatpush1.msra.mxu0 0.0
        %1148 = vmatprep.subr.mxu0 0.0
        %1149 = vmatpush1.msra.mxu0 0.0
        %1150 = vmatprep.subr.mxu0 0.0
        %1151 = vmatpush1.msra.mxu0 0.0
        %1152 = vmatprep.subr.mxu0 0.0
        %1153 = vmatpush1.msra.mxu0 0.0
        %1154 = vmatprep.subr.mxu0 0.0
        %1155 = vmatpush1.msra.mxu0 0.0
        %1156 = vmatprep.subr.mxu0 0.0
        %1157 = vmatpush1.msra.mxu0 0.0
        %1158 = vmatprep.subr.mxu0 0.0
        %1159 = vmatpush1.msra.mxu0 0.0
        %1160 = vmatprep.subr.mxu0 0.0
        %1161 = vmatpush1.msra.mxu0 0.0
        %1162 = vmatprep.subr.mxu0 0.0
        %1163 = vmatpush1.msra.mxu0 0.0
        %1164 = vmatprep.subr.mxu0 0.0
        %1165 = vmatpush1.msra.mxu0 0.0
        %1166 = vmatprep.subr.mxu0 0.0
        %1167 = vmatpush1.msra.mxu0 0.0
        %1168 = vmatprep.subr.mxu0 0.0
        %1169 = vmatpush1.msra.mxu0 0.0
        %1170 = vmatprep.mubr.f32.mxu0 0.0
        %1171 = vmatmul.mubr.f32.gmra.mrb[0].mxu0 %v1104
        %v1172 = vpop.f32.mrb[0].mxu0
        %v1173 = vadd.f32 %v1102, %v1172
        %v1174 = vpop.f32.mrb[0].mxu0
        %1175 = vdwg.mxu0
        %v1176 = vadd.f32 %v1173, %v301
        %v1177 = vsel %vm319, %v1176, 0.0
        %1178 = vadd.xlane.f32.xlu0 %v1177
        %v1179 = vpop.xlane.xlu0 %1178
        %v1180 = vrcp.pop 64.0
        %v1181 = vmul.f32 %v1179, %v1180
        %v1182 = vsub.f32 %v1176, %v1181
        %v1183 = vmul.f32 %v1182, %v1182
        %v1184 = vsel %vm319, %v1183, 0.0
        %1185 = vadd.xlane.f32.xlu0 %v1184
        %v1186 = vpop.xlane.xlu0 %1185
        %v1187 = vmul.f32 %v1186, %v1180
        %v1188 = vadd.f32 %v1187, 1e-05
        %v1189 = vrsqrt.pop %v1188
        %v1190 = vmul.f32 %v1182, %v1189
        %v1191 = vlaneseq
        %v1192 = vshrl.u32 %v1191, 7
        %v1193 = vsub.s32 1, %v1192
        %v1194 = vrot.slane %v302, %v1193
        %v1195 = vmul.f32 %v1190, %v1194
        %v1196 = vlaneseq
        %v1197 = vshrl.u32 %v1196, 7
        %v1198 = vsub.s32 2, %v1197
        %v1199 = vrot.slane %v302, %v1198
        %v1200 = vadd.f32 %v1195, %v1199
        %v1201 = vld [vmem:[%s4] sm:$0xff]
        %v1202 = vld [vmem:[%s4 + $0x8] sm:$0xff]
        %v1203 = vld [vmem:[%s4 + $0x10] sm:$0xff]
        %v1204 = vld [vmem:[%s4 + $0x18] sm:$0xff]
        %v1205 = vld [vmem:[%s4 + $0x20] sm:$0xff]
        %v1206 = vld [vmem:[%s4 + $0x28] sm:$0xff]
        %v1207 = vld [vmem:[%s4 + $0x30] sm:$0xff]
        %v1208 = vld [vmem:[%s4 + $0x38] sm:$0xff]
        %v1209 = vld [vmem:[%s4 + $0x40] sm:$0xff]
        %v1210 = vld [vmem:[%s4 + $0x48] sm:$0xff]
        %v1211 = vld [vmem:[%s4 + $0x50] sm:$0xff]
        %v1212 = vld [vmem:[%s4 + $0x58] sm:$0xff]
        %v1213 = vld [vmem:[%s4 + $0x60] sm:$0xff]
        %v1214 = vld [vmem:[%s4 + $0x68] sm:$0xff]
        %v1215 = vld [vmem:[%s4 + $0x70] sm:$0xff]
        %v1216 = vld [vmem:[%s4 + $0x78] sm:$0xff]
        %v1217 = vld [vmem:[%s5] sm:$0x3]
        %v1219 = vlaneseq
        %v1220 = vshrl.u32 %v1219, 7
        %v1221 = vsub.s32 0, %v1220
        %v1222 = vrot.slane %v1217, %v1221
        %v1223 = vlaneseq
        %v1224 = vshrl.u32 %v1223, 7
        %v1225 = vsub.s32 1, %v1224
        %v1226 = vrot.slane %v1217, %v1225
        %v1230 = vsel %vm319, %v1200, 0
        %1232 = vmatprep.subr.mxu0 %v1202
        %1233 = vmatpush1.msra.mxu0 %v1201
        %1234 = vmatprep.subr.mxu0 %v1204
        %1235 = vmatpush1.msra.mxu0 %v1203
        %1236 = vmatprep.subr.mxu0 %v1206
        %1237 = vmatpush1.msra.mxu0 %v1205
        %1238 = vmatprep.subr.mxu0 %v1208
        %1239 = vmatpush1.msra.mxu0 %v1207
        %1240 = vmatprep.subr.mxu0 %v1210
        %1241 = vmatpush1.msra.mxu0 %v1209
        %1242 = vmatprep.subr.mxu0 %v1212
        %1243 = vmatpush1.msra.mxu0 %v1211
        %1244 = vmatprep.subr.mxu0 %v1214
        %1245 = vmatpush1.msra.mxu0 %v1213
        %1246 = vmatprep.subr.mxu0 %v1216
        %1247 = vmatpush1.msra.mxu0 %v1215
        %1248 = vmatprep.subr.mxu0 0.0
        %1249 = vmatpush1.msra.mxu0 0.0
        %1250 = vmatprep.subr.mxu0 0.0
        %1251 = vmatpush1.msra.mxu0 0.0
        %1252 = vmatprep.subr.mxu0 0.0
        %1253 = vmatpush1.msra.mxu0 0.0
        %1254 = vmatprep.subr.mxu0 0.0
        %1255 = vmatpush1.msra.mxu0 0.0
        %1256 = vmatprep.subr.mxu0 0.0
        %1257 = vmatpush1.msra.mxu0 0.0
        %1258 = vmatprep.subr.mxu0 0.0
        %1259 = vmatpush1.msra.mxu0 0.0
        %1260 = vmatprep.subr.mxu0 0.0
        %1261 = vmatpush1.msra.mxu0 0.0
        %1262 = vmatprep.subr.mxu0 0.0
        %1263 = vmatpush1.msra.mxu0 0.0
        %1264 = vmatprep.subr.mxu0 0.0
        %1265 = vmatpush1.msra.mxu0 0.0
        %1266 = vmatprep.subr.mxu0 0.0
        %1267 = vmatpush1.msra.mxu0 0.0
        %1268 = vmatprep.subr.mxu0 0.0
        %1269 = vmatpush1.msra.mxu0 0.0
        %1270 = vmatprep.subr.mxu0 0.0
        %1271 = vmatpush1.msra.mxu0 0.0
        %1272 = vmatprep.subr.mxu0 0.0
        %1273 = vmatpush1.msra.mxu0 0.0
        %1274 = vmatprep.subr.mxu0 0.0
        %1275 = vmatpush1.msra.mxu0 0.0
        %1276 = vmatprep.subr.mxu0 0.0
        %1277 = vmatpush1.msra.mxu0 0.0
        %1278 = vmatprep.subr.mxu0 0.0
        %1279 = vmatpush1.msra.mxu0 0.0
        %1280 = vmatprep.subr.mxu0 0.0
        %1281 = vmatpush1.msra.mxu0 0.0
        %1282 = vmatprep.subr.mxu0 0.0
        %1283 = vmatpush1.msra.mxu0 0.0
        %1284 = vmatprep.subr.mxu0 0.0
        %1285 = vmatpush1.msra.mxu0 0.0
        %1286 = vmatprep.subr.mxu0 0.0
        %1287 = vmatpush1.msra.mxu0 0.0
        %1288 = vmatprep.subr.mxu0 0.0
        %1289 = vmatpush1.msra.mxu0 0.0
        %1290 = vmatprep.subr.mxu0 0.0
        %1291 = vmatpush1.msra.mxu0 0.0
        %1292 = vmatprep.subr.mxu0 0.0
        %1293 = vmatpush1.msra.mxu0 0.0
        %1294 = vmatprep.subr.mxu0 0.0
        %1295 = vmatpush1.msra.mxu0 0.0
        %1296 = vmatprep.mubr.f32.mxu0 0.0
        %1297 = vmatmul.mubr.f32.gmra.mrb[0].mxu0 %v1230
        %v1298 = vpop.f32.mrb[0].mxu0
        %v1299 = vadd.f32 %v1222, %v1298
        %v1300 = vpop.f32.mrb[0].mxu0
        %v1301 = vadd.f32 %v1226, %v1300
        %1302 = vdwg.mxu0
        %v1303 = vmul.f32 %v1299, 0.5
        %v1304 = vmul.f32 %v1301, 0.5
        %v1305 = vmul.f32 %v1299, 0.70710677
        %v1306 = vmul.f32 %v1301, 0.70710677
        %v1307 = verf.f32.pop %v1305
        %v1308 = verf.f32.pop %v1306
        %v1309 = vadd.f32 %v1307, 1.0
        %v1310 = vadd.f32 %v1308, 1.0
        %v1311 = vmul.f32 %v1303, %v1309
        %v1312 = vmul.f32 %v1304, %v1310
        %v1313 = vld [vmem:[%s6] sm:$0xff]
        %v1314 = vld [vmem:[%s6 + $0x8] sm:$0xff]
        %v1315 = vld [vmem:[%s6 + $0x10] sm:$0xff]
        %v1316 = vld [vmem:[%s6 + $0x18] sm:$0xff]
        %v1317 = vld [vmem:[%s6 + $0x20] sm:$0xff]
        %v1318 = vld [vmem:[%s6 + $0x28] sm:$0xff]
        %v1319 = vld [vmem:[%s6 + $0x30] sm:$0xff]
        %v1320 = vld [vmem:[%s6 + $0x38] sm:$0xff]
        %v1321 = vld [vmem:[%s6 + $0x40] sm:$0xff]
        %v1322 = vld [vmem:[%s6 + $0x48] sm:$0xff]
        %v1323 = vld [vmem:[%s6 + $0x50] sm:$0xff]
        %v1324 = vld [vmem:[%s6 + $0x58] sm:$0xff]
        %v1325 = vld [vmem:[%s6 + $0x60] sm:$0xff]
        %v1326 = vld [vmem:[%s6 + $0x68] sm:$0xff]
        %v1327 = vld [vmem:[%s6 + $0x70] sm:$0xff]
        %v1328 = vld [vmem:[%s6 + $0x78] sm:$0xff]
        %v1329 = vld [vmem:[%s6 + $0x80] sm:$0xff]
        %v1330 = vld [vmem:[%s6 + $0x88] sm:$0xff]
        %v1331 = vld [vmem:[%s6 + $0x90] sm:$0xff]
        %v1332 = vld [vmem:[%s6 + $0x98] sm:$0xff]
        %v1333 = vld [vmem:[%s6 + $0xa0] sm:$0xff]
        %v1334 = vld [vmem:[%s6 + $0xa8] sm:$0xff]
        %v1335 = vld [vmem:[%s6 + $0xb0] sm:$0xff]
        %v1336 = vld [vmem:[%s6 + $0xb8] sm:$0xff]
        %v1337 = vld [vmem:[%s6 + $0xc0] sm:$0xff]
        %v1338 = vld [vmem:[%s6 + $0xc8] sm:$0xff]
        %v1339 = vld [vmem:[%s6 + $0xd0] sm:$0xff]
        %v1340 = vld [vmem:[%s6 + $0xd8] sm:$0xff]
        %v1341 = vld [vmem:[%s6 + $0xe0] sm:$0xff]
        %v1342 = vld [vmem:[%s6 + $0xe8] sm:$0xff]
        %v1343 = vld [vmem:[%s6 + $0xf0] sm:$0xff]
        %v1344 = vld [vmem:[%s6 + $0xf8] sm:$0xff]
        %v1345 = vlaneseq
        %v1346 = vshrl.u32 %v1345, 7
        %v1347 = vsub.s32 3, %v1346
        %v1348 = vrot.slane %v302, %v1347
        %1349 = vmatprep.subr.mxu0 0.0
        %1350 = vmatpush1.msra.mxu0 %v1313
        %1351 = vmatprep.subr.mxu0 0.0
        %1352 = vmatpush1.msra.mxu0 %v1314
        %1353 = vmatprep.subr.mxu0 0.0
        %1354 = vmatpush1.msra.mxu0 %v1315
        %1355 = vmatprep.subr.mxu0 0.0
        %1356 = vmatpush1.msra.mxu0 %v1316
        %1357 = vmatprep.subr.mxu0 0.0
        %1358 = vmatpush1.msra.mxu0 %v1317
        %1359 = vmatprep.subr.mxu0 0.0
        %1360 = vmatpush1.msra.mxu0 %v1318
        %1361 = vmatprep.subr.mxu0 0.0
        %1362 = vmatpush1.msra.mxu0 %v1319
        %1363 = vmatprep.subr.mxu0 0.0
        %1364 = vmatpush1.msra.mxu0 %v1320
        %1365 = vmatprep.subr.mxu0 0.0
        %1366 = vmatpush1.msra.mxu0 %v1321
        %1367 = vmatprep.subr.mxu0 0.0
        %1368 = vmatpush1.msra.mxu0 %v1322
        %1369 = vmatprep.subr.mxu0 0.0
        %1370 = vmatpush1.msra.mxu0 %v1323
        %1371 = vmatprep.subr.mxu0 0.0
        %1372 = vmatpush1.msra.mxu0 %v1324
        %1373 = vmatprep.subr.mxu0 0.0
        %1374 = vmatpush1.msra.mxu0 %v1325
        %1375 = vmatprep.subr.mxu0 0.0
        %1376 = vmatpush1.msra.mxu0 %v1326
        %1377 = vmatprep.subr.mxu0 0.0
        %1378 = vmatpush1.msra.mxu0 %v1327
        %1379 = vmatprep.subr.mxu0 0.0
        %1380 = vmatpush1.msra.mxu0 %v1328
        %1381 = vmatprep.subr.mxu0 0.0
        %1382 = vmatpush1.msra.mxu0 %v1329
        %1383 = vmatprep.subr.mxu0 0.0
        %1384 = vmatpush1.msra.mxu0 %v1330
        %1385 = vmatprep.subr.mxu0 0.0
        %1386 = vmatpush1.msra.mxu0 %v1331
        %1387 = vmatprep.subr.mxu0 0.0
        %1388 = vmatpush1.msra.mxu0 %v1332
        %1389 = vmatprep.subr.mxu0 0.0
        %1390 = vmatpush1.msra.mxu0 %v1333
        %1391 = vmatprep.subr.mxu0 0.0
        %1392 = vmatpush1.msra.mxu0 %v1334
        %1393 = vmatprep.subr.mxu0 0.0
        %1394 = vmatpush1.msra.mxu0 %v1335
        %1395 = vmatprep.subr.mxu0 0.0
        %1396 = vmatpush1.msra.mxu0 %v1336
        %1397 = vmatprep.subr.mxu0 0.0
        %1398 = vmatpush1.msra.mxu0 %v1337
        %1399 = vmatprep.subr.mxu0 0.0
        %1400 = vmatpush1.msra.mxu0 %v1338
        %1401 = vmatprep.subr.mxu0 0.0
        %1402 = vmatpush1.msra.mxu0 %v1339
        %1403 = vmatprep.subr.mxu0 0.0
        %1404 = vmatpush1.msra.mxu0 %v1340
        %1405 = vmatprep.subr.mxu0 0.0
        %1406 = vmatpush1.msra.mxu0 %v1341
        %1407 = vmatprep.subr.mxu0 0.0
        %1408 = vmatpush1.msra.mxu0 %v1342
        %1409 = vmatprep.subr.mxu0 0.0
        %1410 = vmatpush1.msra.mxu0 %v1343
        %1411 = vmatprep.subr.mxu0 0.0
        %1412 = vmatpush1.msra.mxu0 %v1344
        %1413 = vmatprep.mubr.f32.mxu0 %v1312
        %1414 = vmatmul.mubr.f32.gmra.mrb[0].mxu0 %v1311
        %v1415 = vpop.f32.mrb[0].mxu0
        %v1416 = vadd.f32 %v1348, %v1415
        %v1417 = vpop.f32.mrb[0].mxu0
        %1418 = vdwg.mxu0
        %v1419 = vadd.f32 %v1416, %v1200
        %v1420 = vsel %vm319, %v1419, 0.0
        %1421 = vadd.xlane.f32.xlu0 %v1420
        %v1422 = vpop.xlane.xlu0 %1421
        %v1423 = vmul.f32 %v1422, %v1180
        %v1424 = vsub.f32 %v1419, %v1423
        %v1425 = vmul.f32 %v1424, %v1424
        %v1426 = vsel %vm319, %v1425, 0.0
        %1427 = vadd.xlane.f32.xlu0 %v1426
        %v1428 = vpop.xlane.xlu0 %1427
        %v1429 = vmul.f32 %v1428, %v1180
        %v1430 = vadd.f32 %v1429, 1e-05
        %v1431 = vrsqrt.pop %v1430
        %v1432 = vmul.f32 %v1424, %v1431
        %v1433 = vlaneseq
        %v1434 = vshrl.u32 %v1433, 7
        %v1435 = vsub.s32 4, %v1434
        %v1436 = vrot.slane %v302, %v1435
        %v1437 = vmul.f32 %v1432, %v1436
        %v1438 = vlaneseq
        %v1439 = vshrl.u32 %v1438, 7
        %v1440 = vsub.s32 5, %v1439
        %v1441 = vrot.slane %v302, %v1440
        %v1442 = vadd.f32 %v1437, %v1441
        %1443 = vst.msk [vmem:[%s296] sm:$0xff] %vm319, %v1442
        %s1444 = sand.u32 %s203, 1
        %s1445 = scalar_lea.sflag [#allocation3], %s1444
        %s1446 = sand.u32 %s203, 1
        %s1447 = smul.addr %s1446, 8
        %s1448 = scalar_lea.vmem [#allocation2], %s1447
        // Predicated region
        $region53: #{tpu_custom_call.1} parent=51 // pred_check
          %p1449 = pneg %p213
        $region54: #{tpu_custom_call.1} parent=51 // pred_check_branch
          %1451 = sbr.rel (%p1449) target = $region56
        $region55: #{tpu_custom_call.1} parent=51 // pred_region
          %s1453 = ssub.s32 128, 128
          %1454 = vsyncadd %s1445, %s1453
          %s1455 = smul.addr %s22, 128
          %s1456 = scalar_lea.hbm %s8, %s1455
          %s1458 = sshll.u32 %s1448, 4
          %s1459 = int_to_ptr.vmem [resolvable:$true] %s1458
          %1461 = dma.vmem_to_hbm [thread:$0]  %s1459, 128, %s1456, %s1445
        $region56: #{tpu_custom_call.1} parent=51 // pred_fallthru
          _
      $region52: #{tpu_custom_call.1} parent=5 // pred_fallthru
        _
      %p1462 = scmp.le.s32.totalorder 2, %s17
      // Predicated region
      $region57: #{tpu_custom_call.1} parent=5 // pred_check
        %p1463 = pneg %p1462
      $region58: #{tpu_custom_call.1} parent=5 // pred_check_branch
        %1465 = sbr.rel (%p1463) target = $region60
      $region59: #{tpu_custom_call.1} parent=5 // pred_region
        %s1466 = ssub.s32 %s17, 2
        // Predicated region
        $region61: #{tpu_custom_call.1} parent=59 // pred_check
          %p1467 = pneg %p219
        $region62: #{tpu_custom_call.1} parent=59 // pred_check_branch
          %1469 = sbr.rel (%p1467) target = $region64
        $region63: #{tpu_custom_call.1} parent=59 // pred_region
          %s1470 = sand.u32 %s204, 1
          %s1471 = scalar_lea.sflag [#allocation3], %s1470
          %s1472 = sand.u32 %s204, 1
          %s1473 = smul.addr %s1472, 8
          %s1474 = scalar_lea.vmem [#allocation2], %s1473
          %1475 = dma.done %s1471, 128
        $region64: #{tpu_custom_call.1} parent=59 // pred_fallthru
          _
      $region60: #{tpu_custom_call.1} parent=5 // pred_fallthru
        _
    $region6: #{tpu_custom_call.1} parent=1 // loop_footer
      %s21 = sadd.s32 1, %s17
    $region7: #{tpu_custom_call.1} parent=1 // loop_footer_branch
      %16 = sbr.rel target = $region3
    $region8: #{tpu_custom_call.1} parent=1 // loop_exit
      _
    %1476 = vsyncpa [#allocation3], 1
    %s1477 = scalar_lea.sflag [#allocation3], 1
    %1478 = vsyncpa %s1477, 1

</llo_original>
